<compile_context>
chip_gen: v5e
topology: v5e:2x2
jax: 0.10.0
libtpu: 0.0.40
codegen_flags: <defaults>
</compile_context>

<pallas_src>
import functools

import numpy as np
import jax
import jax.numpy as jnp
from jax import lax
from jax.experimental import pallas as pl
from jax.experimental.pallas import tpu as pltpu


def _conv3d_kernel(x_ref, w_ref, b_ref, o_ref, *,
                   Dk, Hk, D, H, W, Cin, Cout, D_out, n_rep):
    # x_ref : (1, D, H, W*Cin)            bf16, lane-dense input slab for one batch element
    # w_ref : (Dk, W*Cin, Hk*W*Cout)      bf16 banded weights (kw taps, W-pad, Cin folded into K;
    #                                     the Hk taps concatenated along N)
    # b_ref : (1, W*Cout)                 f32 bias tiled across W (lane-dense)
    # o_ref : (1, n_rep*D_out, H, W*Cout) f32 output (all depth replicas)
    K = W * Cin
    Wn = W * Cout
    M = D_out * H

    # (D, H, W*Cin) -> (D*H, W*Cin): layout no-op (H is a multiple of 8), no copies.
    x2d = x_ref[0].reshape(D * H, K)

    # Row -> h index within each depth slice; hoisted out of the tap loop (only needed if Hk>1).
    h_pos = None
    if Hk > 1:
        h_pos = lax.broadcasted_iota(jnp.int32, (M, 1), 0) % H

    acc = None
    for kd in range(Dk):                       # Dk*Hk is tiny (4 here) -> deliberate static unroll
        # Sublane-aligned slice (offset kd*H, length D_out*H): rows (kd+d)*H + h.
        base = x2d[kd * H:kd * H + M, :]
        # One bf16 matmul per kd, all Hk taps at once: (M, K) x (K, Hk*Wn) -> f32 (M, Hk*Wn).
        p_all = jnp.dot(base, w_ref[kd], preferred_element_type=jnp.float32)
        for kh in range(Hk):
            s = (Hk - 1) - kh                  # causal shift along H for this tap
            blk = p_all[:, kh * Wn:(kh + 1) * Wn]          # lane-tile aligned slice
            if s == 0:
                contrib = blk
            else:
                # Shift the result down by s rows and zero rows with h < s in every depth slice.
                shifted = jnp.concatenate(
                    [jnp.zeros((s, Wn), jnp.float32), blk[:M - s, :]], axis=0)
                contrib = jnp.where(h_pos >= s, shifted, 0.0)
            acc = contrib if acc is None else acc + contrib

    y = acc + b_ref[...]                       # bias added once (sublane broadcast)
    y = y.reshape(D_out, H, Wn)                # layout no-op

    # The three depth replicas are identical: compute once, store three times (128-lane dense).
    for r in range(n_rep):
        o_ref[0, r * D_out:(r + 1) * D_out, :, :] = y


def _build_banded_weight(weight, Cin, Cout, Wk, Hk, W):
    """(Cout, Cin, Dk, Hk, Wk) -> (Dk, W*Cin, Hk*W*Cout) banded matmul weights (bf16).

    band[kd, w_in*Cin + ci, kh*(W*Cout) + w_out*Cout + co] = weight[co, ci, kd, kh, kw]
      where kw = w_in - w_out + (Wk-1), and 0 elsewhere (invalid kw OR w_in falling in the
      causal left pad are both dropped -> the W pad is folded into the band).
    NOTE: size scales as O(Dk*Hk * W^2 * Cin * Cout); see the assert/TODO in the wrapper.
    """
    Dk = weight.shape[2]
    wt = jnp.transpose(weight, (2, 3, 4, 1, 0))            # (Dk, Hk, Wk, Cin, Cout)

    p = jnp.arange(W * Cin)                                 # input (w_in, ci) index (un-padded)
    q = jnp.arange(W * Cout)                                # output (w_out, co) index
    w_in = p // Cin
    ci = p % Cin
    w_out = q // Cout
    co = q % Cout

    kw = w_in[:, None] - w_out[None, :] + (Wk - 1)          # (W*Cin, W*Cout)
    valid = (kw >= 0) & (kw < Wk)
    kw_safe = jnp.clip(kw, 0, Wk - 1)

    band = wt[:, :, kw_safe, ci[:, None], co[None, :]]      # (Dk, Hk, W*Cin, W*Cout)
    band = jnp.where(valid[None, None], band, 0.0)
    # Concatenate the Hk taps along N: (Dk, W*Cin, Hk, W*Cout) -> (Dk, W*Cin, Hk*W*Cout).
    band = jnp.transpose(band, (0, 2, 1, 3)).reshape(Dk, W * Cin, Hk * W * Cout)
    return band.astype(jnp.bfloat16)


def down_right_shifted_conv3d_old(x_ncdhw, weight, bias, kernel_size, stride=(1, 1, 1),
                                  *, single_buffer_consts=True):
    """weight: (Cout, Cin, Dk, Hk, Wk) [already weight-normed], bias: (Cout,)."""
    Dk, Hk, Wk = kernel_size
    # TODO(synk): only unit stride implemented (the module's default stride=(1,1,1)).
    assert tuple(stride) == (1, 1, 1)
    N, Cin, D, H, W = x_ncdhw.shape
    Cout = weight.shape[0]
    D_out = D - Dk + 1
    n_rep = 3

    # NCDHW -> (N, D, H, W*Cin), channels folded onto the lane axis, bf16 for the MXU
    # (f32 accumulation is kept inside the kernel via preferred_element_type).
    x = jnp.transpose(x_ncdhw, (0, 2, 3, 4, 1)).reshape(N, D, H, W * Cin).astype(jnp.bfloat16)

    w_band = _build_banded_weight(weight.astype(jnp.float32), Cin, Cout, Wk, Hk, W)
    b_tile = jnp.tile(bias.astype(jnp.float32), W).reshape(1, W * Cout)

    # TODO(synk): for production W/Cin/Cout (especially v7x's 64 MiB VMEM), add a W-tile grid
    # axis for the banded weight and set vmem_limit_bytes; the band is O(Dk*Hk*W^2*Cin*Cout).
    assert w_band.nbytes <= (8 << 20), "banded weight too large for single-block VMEM residency"

    kernel = functools.partial(
        _conv3d_kernel,
        Dk=Dk, Hk=Hk, D=D, H=H, W=W, Cin=Cin, Cout=Cout, D_out=D_out, n_rep=n_rep)

    const_kwargs = {}
    if single_buffer_consts:
        # Constant operands (index_map never changes) -> no benefit from double buffering.
        const_kwargs = dict(pipeline_mode=pl.Buffered(buffer_count=1))
    w_spec = pl.BlockSpec((Dk, W * Cin, Hk * W * Cout), lambda n: (0, 0, 0), **const_kwargs)
    b_spec = pl.BlockSpec((1, W * Cout), lambda n: (0, 0), **const_kwargs)

    conv = pl.pallas_call(
        kernel,
        out_shape=jax.ShapeDtypeStruct((N, n_rep * D_out, H, W * Cout), jnp.float32),
        grid=(N,),   # one step per batch element; all 3 replicas written in the same step
        in_specs=[
            pl.BlockSpec((1, D, H, W * Cin), lambda n: (n, 0, 0, 0)),
            w_spec,
            b_spec,
        ],
        out_specs=pl.BlockSpec((1, n_rep * D_out, H, W * Cout), lambda n: (n, 0, 0, 0)),
        # N>=2 keeps both v7x TensorCores busy; v5e/v6e are single-TC and unaffected.
        compiler_params=pltpu.CompilerParams(dimension_semantics=("parallel",)),
    )
    y = conv(x, w_band, b_tile)                     # (N, 3*D_out, H, W*Cout)

    # (N, 3*D_out, H, W*Cout) -> NCDHW (replicas already concatenated along depth).
    y = y.reshape(N, n_rep * D_out, H, W, Cout)
    return jnp.transpose(y, (0, 4, 1, 2, 3))


def init_params(key, Cin, Cout, kernel_size):
    """Deterministic synthetic init, reproducing nn.utils.weight_norm(dim=0) reparam."""
    Dk, Hk, Wk = kernel_size
    kv, kg, kb = jax.random.split(key, 3)
    v = jax.random.normal(kv, (Cout, Cin, Dk, Hk, Wk), jnp.float32) * 0.1
    g = 1.0 + 0.1 * jax.random.normal(kg, (Cout,), jnp.float32)
    bias = 0.1 * jax.random.normal(kb, (Cout,), jnp.float32)
    v_norm = jnp.sqrt(jnp.sum(v * v, axis=(1, 2, 3, 4), keepdims=True))
    weight = g.reshape(Cout, 1, 1, 1, 1) * v / v_norm
    return weight, bias


def reference(x_ncdhw, weight, bias, kernel_size):
    """Pure-JAX reference of the PyTorch forward pass (for verification)."""
    Dk, Hk, Wk = kernel_size
    xp = jnp.pad(x_ncdhw, ((0, 0), (0, 0), (0, 0), (Hk - 1, 0), (Wk - 1, 0)))
    y = lax.conv_general_dilated(
        xp, weight, window_strides=(1, 1, 1), padding="VALID",
        dimension_numbers=("NCDHW", "OIDHW", "NCDHW"),
        precision=lax.Precision.HIGHEST)
    y = y + bias.reshape(1, -1, 1, 1, 1)
    return jnp.concatenate([y, y, y], axis=2)


if __name__ == "__main__":
    key = jax.random.PRNGKey(0)
    kx, kp = jax.random.split(key)

    N, Cin, Cout = 2, 4, 8
    D, H, W = 8, 16, 16
    ksize = (2, 2, 2)

    x = jax.random.normal(kx, (N, Cin, D, H, W), jnp.float32)
    weight, bias = init_params(kp, Cin, Cout, ksize)

    # Exact f32 reference, and a reference built from the same bf16-rounded operands the
    # kernel feeds to the MXU (kernel accumulates in f32, so this comparison is tight).
    ref = reference(x, weight, bias, ksize)
    x_q = x.astype(jnp.bfloat16).astype(jnp.float32)
    w_q = weight.astype(jnp.bfloat16).astype(jnp.float32)
    ref_q = reference(x_q, w_q, bias, ksize)

    def run_and_check(single_buffer_consts):
        out = down_right_shifted_conv3d_old(
            x, weight, bias, ksize, single_buffer_consts=single_buffer_consts)
        out = jax.block_until_ready(out)
        assert out.shape == (N, Cout, 3 * (D - ksize[0] + 1), H, W), out.shape
        out_np = np.asarray(out)
        # Tight check vs the bf16-quantized-operand reference (f32 accumulation in both).
        np.testing.assert_allclose(out_np, np.asarray(ref_q), rtol=2e-3, atol=2e-3)
        # Loose check vs the exact f32 reference (bf16 MXU operand rounding only).
        np.testing.assert_allclose(out_np, np.asarray(ref), rtol=2e-2, atol=2e-2)
        return out

    try:
        out = run_and_check(True)
    except Exception:
        # This jax build rejected pipeline_mode=pl.Buffered(1) on the constant operands
        # (or it misbehaved) -> fall back to default double buffering, re-verify.
        out = run_and_check(False)

    print("KERNEL_OK")
</pallas_src>

<mosaic_0001>
module attributes {stable_mosaic.version = 11 : i64} {
  func.func @_conv3d_kernel(%arg0: i32, %arg1: memref<1x8x16x64xbf16, #tpu.memory_space<vmem>>, %arg2: memref<2x64x256xbf16, #tpu.memory_space<vmem>>, %arg3: memref<1x128xf32, #tpu.memory_space<vmem>>, %arg4: memref<1x21x16x128xf32, #tpu.memory_space<vmem>>) attributes {dimension_semantics = [#tpu.dimension_semantics<parallel>], iteration_bounds = array<i64: 2>, scalar_prefetch = 0 : i64, scratch_operands = 0 : i64, tpu.core_type = #tpu.core_type<tc>, window_params = [{transform_indices = @transform_0, window_bounds = array<i64: 1, 8, 16, 64>}, {pipeline_mode = #tpu.pipeline_mode<synchronous>, transform_indices = @transform_1, window_bounds = array<i64: 2, 64, 256>}, {pipeline_mode = #tpu.pipeline_mode<synchronous>, transform_indices = @transform_2, window_bounds = array<i64: 1, 128>}, {transform_indices = @transform_3, window_bounds = array<i64: 1, 21, 16, 128>}]} {
    %c0 = arith.constant 0 : index
    %c0_0 = arith.constant 0 : index
    %c0_1 = arith.constant 0 : index
    %c0_2 = arith.constant 0 : index
    %0 = vector.load %arg1[%c0, %c0_0, %c0_1, %c0_2] : memref<1x8x16x64xbf16, #tpu.memory_space<vmem>>, vector<1x8x16x64xbf16>
    %1 = vector.shape_cast %0 : vector<1x8x16x64xbf16> to vector<8x16x64xbf16>
    %2 = vector.shape_cast %1 : vector<8x16x64xbf16> to vector<128x64xbf16>
    %3 = tpu.iota {dimensions = array<i32: 0>} : vector<112x1xi32>
    %c16_i32 = arith.constant 16 : i32
    %c0_i32 = arith.constant 0 : i32
    %4 = arith.cmpi eq, %c16_i32, %c0_i32 : i32
    %c1_i32 = arith.constant 1 : i32
    %5 = arith.select %4, %c1_i32, %c16_i32 : i32
    %6 = vector.broadcast %5 : i32 to vector<112x1xi32>
    %7 = arith.remsi %3, %6 : vector<112x1xi32>
    %c0_i32_3 = arith.constant 0 : i32
    %8 = vector.broadcast %c0_i32_3 : i32 to vector<112x1xi32>
    %9 = arith.cmpi ne, %7, %8 : vector<112x1xi32>
    %c0_i32_4 = arith.constant 0 : i32
    %10 = vector.broadcast %c0_i32_4 : i32 to vector<112x1xi32>
    %11 = arith.cmpi slt, %7, %10 : vector<112x1xi32>
    %c0_i32_5 = arith.constant 0 : i32
    %12 = arith.cmpi slt, %5, %c0_i32_5 : i32
    %13 = vector.broadcast %12 : i1 to vector<112x1xi1>
    %14 = vector.broadcast %13 : vector<112x1xi1> to vector<112x1xi1>
    %15 = arith.xori %11, %14 : vector<112x1xi1>
    %16 = arith.andi %15, %9 : vector<112x1xi1>
    %17 = vector.broadcast %5 : i32 to vector<112x1xi32>
    %18 = arith.addi %7, %17 : vector<112x1xi32>
    %19 = arith.select %16, %18, %7 : vector<112x1xi1>, vector<112x1xi32>
    %20 = vector.extract_strided_slice %2 {offsets = [0, 0], sizes = [112, 64], strides = [1, 1]} : vector<128x64xbf16> to vector<112x64xbf16>
    %c0_6 = arith.constant 0 : index
    %c0_7 = arith.constant 0 : index
    %c0_8 = arith.constant 0 : index
    %21 = vector.load %arg2[%c0_6, %c0_7, %c0_8] : memref<2x64x256xbf16, #tpu.memory_space<vmem>>, vector<1x64x256xbf16>
    %22 = vector.shape_cast %21 : vector<1x64x256xbf16> to vector<64x256xbf16>
    %cst = arith.constant dense<0.000000e+00> : vector<112x256xf32>
    %23 = tpu.matmul %20, %22, %cst {dimension_numbers = #tpu.dot_dimension_numbers<[1], [0], [0], [1], [0, 0, 1, 1], [], []>} : vector<112x64xbf16>, vector<64x256xbf16>, vector<112x256xf32> -> vector<112x256xf32>
    %24 = vector.extract_strided_slice %23 {offsets = [0, 0], sizes = [112, 128], strides = [1, 1]} : vector<112x256xf32> to vector<112x128xf32>
    %cst_9 = arith.constant 0.000000e+00 : f32
    %25 = vector.broadcast %cst_9 : f32 to vector<1x128xf32>
    %26 = vector.extract_strided_slice %24 {offsets = [0, 0], sizes = [111, 128], strides = [1, 1]} : vector<112x128xf32> to vector<111x128xf32>
    %27 = tpu.concatenate %25, %26 in 0 : vector<1x128xf32>, vector<111x128xf32> -> vector<112x128xf32>
    %c1_i32_10 = arith.constant 1 : i32
    %28 = vector.broadcast %c1_i32_10 : i32 to vector<112x1xi32>
    %29 = arith.cmpi sge, %19, %28 : vector<112x1xi32>
    %cst_11 = arith.constant 0.000000e+00 : f32
    %30 = vector.shape_cast %29 : vector<112x1xi1> to vector<112x1xi1>
    %31 = vector.broadcast %30 : vector<112x1xi1> to vector<112x128xi1>
    %32 = vector.broadcast %cst_11 : f32 to vector<112x128xf32>
    %33 = arith.select %31, %27, %32 : vector<112x128xi1>, vector<112x128xf32>
    %34 = vector.extract_strided_slice %23 {offsets = [0, 128], sizes = [112, 128], strides = [1, 1]} : vector<112x256xf32> to vector<112x128xf32>
    %35 = arith.addf %33, %34 : vector<112x128xf32>
    %36 = vector.extract_strided_slice %2 {offsets = [16, 0], sizes = [112, 64], strides = [1, 1]} : vector<128x64xbf16> to vector<112x64xbf16>
    %c1 = arith.constant 1 : index
    %c0_12 = arith.constant 0 : index
    %c0_13 = arith.constant 0 : index
    %37 = vector.load %arg2[%c1, %c0_12, %c0_13] : memref<2x64x256xbf16, #tpu.memory_space<vmem>>, vector<1x64x256xbf16>
    %38 = vector.shape_cast %37 : vector<1x64x256xbf16> to vector<64x256xbf16>
    %cst_14 = arith.constant dense<0.000000e+00> : vector<112x256xf32>
    %39 = tpu.matmul %36, %38, %cst_14 {dimension_numbers = #tpu.dot_dimension_numbers<[1], [0], [0], [1], [0, 0, 1, 1], [], []>} : vector<112x64xbf16>, vector<64x256xbf16>, vector<112x256xf32> -> vector<112x256xf32>
    %40 = vector.extract_strided_slice %39 {offsets = [0, 0], sizes = [112, 128], strides = [1, 1]} : vector<112x256xf32> to vector<112x128xf32>
    %cst_15 = arith.constant 0.000000e+00 : f32
    %41 = vector.broadcast %cst_15 : f32 to vector<1x128xf32>
    %42 = vector.extract_strided_slice %40 {offsets = [0, 0], sizes = [111, 128], strides = [1, 1]} : vector<112x128xf32> to vector<111x128xf32>
    %43 = tpu.concatenate %41, %42 in 0 : vector<1x128xf32>, vector<111x128xf32> -> vector<112x128xf32>
    %c1_i32_16 = arith.constant 1 : i32
    %44 = vector.broadcast %c1_i32_16 : i32 to vector<112x1xi32>
    %45 = arith.cmpi sge, %19, %44 : vector<112x1xi32>
    %cst_17 = arith.constant 0.000000e+00 : f32
    %46 = vector.shape_cast %45 : vector<112x1xi1> to vector<112x1xi1>
    %47 = vector.broadcast %46 : vector<112x1xi1> to vector<112x128xi1>
    %48 = vector.broadcast %cst_17 : f32 to vector<112x128xf32>
    %49 = arith.select %47, %43, %48 : vector<112x128xi1>, vector<112x128xf32>
    %50 = arith.addf %35, %49 : vector<112x128xf32>
    %51 = vector.extract_strided_slice %39 {offsets = [0, 128], sizes = [112, 128], strides = [1, 1]} : vector<112x256xf32> to vector<112x128xf32>
    %52 = arith.addf %50, %51 : vector<112x128xf32>
    %c0_18 = arith.constant 0 : index
    %c0_19 = arith.constant 0 : index
    %53 = vector.load %arg3[%c0_18, %c0_19] : memref<1x128xf32, #tpu.memory_space<vmem>>, vector<1x128xf32>
    %54 = vector.broadcast %53 : vector<1x128xf32> to vector<112x128xf32>
    %55 = arith.addf %52, %54 : vector<112x128xf32>
    %56 = vector.shape_cast %55 : vector<112x128xf32> to vector<7x16x128xf32>
    %c0_20 = arith.constant 0 : index
    %c0_21 = arith.constant 0 : index
    %c0_22 = arith.constant 0 : index
    %c0_23 = arith.constant 0 : index
    %57 = vector.load %arg4[%c0_20, %c0_21, %c0_22, %c0_23] : memref<1x21x16x128xf32, #tpu.memory_space<vmem>>, vector<1x7x16x128xf32>
    %58 = vector.shape_cast %57 : vector<1x7x16x128xf32> to vector<7x16x128xf32>
    %59 = vector.shape_cast %56 : vector<7x16x128xf32> to vector<1x7x16x128xf32>
    tpu.vector_store %arg4[%c0_20, %c0_21, %c0_22, %c0_23], %59 {strides = array<i32>} : memref<1x21x16x128xf32, #tpu.memory_space<vmem>>, vector<1x7x16x128xf32>,
    %c0_24 = arith.constant 0 : index
    %c7 = arith.constant 7 : index
    %c0_25 = arith.constant 0 : index
    %c0_26 = arith.constant 0 : index
    %60 = vector.load %arg4[%c0_24, %c7, %c0_25, %c0_26] : memref<1x21x16x128xf32, #tpu.memory_space<vmem>>, vector<1x7x16x128xf32>
    %61 = vector.shape_cast %60 : vector<1x7x16x128xf32> to vector<7x16x128xf32>
    %62 = vector.shape_cast %56 : vector<7x16x128xf32> to vector<1x7x16x128xf32>
    tpu.vector_store %arg4[%c0_24, %c7, %c0_25, %c0_26], %62 {strides = array<i32>} : memref<1x21x16x128xf32, #tpu.memory_space<vmem>>, vector<1x7x16x128xf32>,
    %c0_27 = arith.constant 0 : index
    %c14 = arith.constant 14 : index
    %c0_28 = arith.constant 0 : index
    %c0_29 = arith.constant 0 : index
    %63 = vector.load %arg4[%c0_27, %c14, %c0_28, %c0_29] : memref<1x21x16x128xf32, #tpu.memory_space<vmem>>, vector<1x7x16x128xf32>
    %64 = vector.shape_cast %63 : vector<1x7x16x128xf32> to vector<7x16x128xf32>
    %65 = vector.shape_cast %56 : vector<7x16x128xf32> to vector<1x7x16x128xf32>
    tpu.vector_store %arg4[%c0_27, %c14, %c0_28, %c0_29], %65 {strides = array<i32>} : memref<1x21x16x128xf32, #tpu.memory_space<vmem>>, vector<1x7x16x128xf32>,
    return
  }
  func.func @transform_0(%arg0: i32) -> (i32, i32, i32, i32) {
    %c0_i32 = arith.constant 0 : i32
    %c0_i32_0 = arith.constant 0 : i32
    %c0_i32_1 = arith.constant 0 : i32
    %c0_i32_2 = arith.constant 0 : i32
    return %arg0, %c0_i32, %c0_i32_0, %c0_i32_1 : i32, i32, i32, i32
  }
  func.func @transform_1(%arg0: i32) -> (i32, i32, i32) {
    %c0_i32 = arith.constant 0 : i32
    %c0_i32_0 = arith.constant 0 : i32
    %c0_i32_1 = arith.constant 0 : i32
    %c0_i32_2 = arith.constant 0 : i32
    return %c0_i32, %c0_i32_0, %c0_i32_1 : i32, i32, i32
  }
  func.func @transform_2(%arg0: i32) -> (i32, i32) {
    %c0_i32 = arith.constant 0 : i32
    %c0_i32_0 = arith.constant 0 : i32
    %c0_i32_1 = arith.constant 0 : i32
    return %c0_i32, %c0_i32_0 : i32, i32
  }
  func.func @transform_3(%arg0: i32) -> (i32, i32, i32, i32) {
    %c0_i32 = arith.constant 0 : i32
    %c0_i32_0 = arith.constant 0 : i32
    %c0_i32_1 = arith.constant 0 : i32
    %c0_i32_2 = arith.constant 0 : i32
    return %arg0, %c0_i32, %c0_i32_0, %c0_i32_1 : i32, i32, i32, i32
  }
}

module attributes {stable_mosaic.version = 11 : i64} {
  func.func @_conv3d_kernel(%arg0: i32, %arg1: memref<1x8x16x64xbf16, #tpu.memory_space<vmem>>, %arg2: memref<2x64x256xbf16, #tpu.memory_space<vmem>>, %arg3: memref<1x128xf32, #tpu.memory_space<vmem>>, %arg4: memref<1x21x16x128xf32, #tpu.memory_space<vmem>>) attributes {dimension_semantics = [#tpu.dimension_semantics<parallel>], iteration_bounds = array<i64: 2>, scalar_prefetch = 0 : i64, scratch_operands = 0 : i64, tpu.core_type = #tpu.core_type<tc>, window_params = [{transform_indices = @transform_0, window_bounds = array<i64: 1, 8, 16, 64>}, {pipeline_mode = #tpu.pipeline_mode<synchronous>, transform_indices = @transform_1, window_bounds = array<i64: 2, 64, 256>}, {pipeline_mode = #tpu.pipeline_mode<synchronous>, transform_indices = @transform_2, window_bounds = array<i64: 1, 128>}, {transform_indices = @transform_3, window_bounds = array<i64: 1, 21, 16, 128>}]} {
    %c0 = arith.constant 0 : index
    %c0_0 = arith.constant 0 : index
    %c0_1 = arith.constant 0 : index
    %c0_2 = arith.constant 0 : index
    %0 = vector.load %arg1[%c0, %c0_0, %c0_1, %c0_2] : memref<1x8x16x64xbf16, #tpu.memory_space<vmem>>, vector<1x8x16x64xbf16>
    %1 = vector.shape_cast %0 : vector<1x8x16x64xbf16> to vector<8x16x64xbf16>
    %2 = vector.shape_cast %1 : vector<8x16x64xbf16> to vector<128x64xbf16>
    %3 = tpu.iota {dimensions = array<i32: 0>} : vector<112x1xi32>
    %c16_i32 = arith.constant 16 : i32
    %c0_i32 = arith.constant 0 : i32
    %4 = arith.cmpi eq, %c16_i32, %c0_i32 : i32
    %c1_i32 = arith.constant 1 : i32
    %5 = arith.select %4, %c1_i32, %c16_i32 : i32
    %6 = vector.broadcast %5 : i32 to vector<112x1xi32>
    %7 = arith.remsi %3, %6 : vector<112x1xi32>
    %c0_i32_3 = arith.constant 0 : i32
    %8 = vector.broadcast %c0_i32_3 : i32 to vector<112x1xi32>
    %9 = arith.cmpi ne, %7, %8 : vector<112x1xi32>
    %c0_i32_4 = arith.constant 0 : i32
    %10 = vector.broadcast %c0_i32_4 : i32 to vector<112x1xi32>
    %11 = arith.cmpi slt, %7, %10 : vector<112x1xi32>
    %c0_i32_5 = arith.constant 0 : i32
    %12 = arith.cmpi slt, %5, %c0_i32_5 : i32
    %13 = vector.broadcast %12 : i1 to vector<112x1xi1>
    %14 = vector.broadcast %13 : vector<112x1xi1> to vector<112x1xi1>
    %15 = arith.xori %11, %14 : vector<112x1xi1>
    %16 = arith.andi %15, %9 : vector<112x1xi1>
    %17 = vector.broadcast %5 : i32 to vector<112x1xi32>
    %18 = arith.addi %7, %17 : vector<112x1xi32>
    %19 = arith.select %16, %18, %7 : vector<112x1xi1>, vector<112x1xi32>
    %20 = vector.extract_strided_slice %2 {offsets = [0, 0], sizes = [112, 64], strides = [1, 1]} : vector<128x64xbf16> to vector<112x64xbf16>
    %c0_6 = arith.constant 0 : index
    %c0_7 = arith.constant 0 : index
    %c0_8 = arith.constant 0 : index
    %21 = vector.load %arg2[%c0_6, %c0_7, %c0_8] : memref<2x64x256xbf16, #tpu.memory_space<vmem>>, vector<1x64x256xbf16>
    %22 = vector.shape_cast %21 : vector<1x64x256xbf16> to vector<64x256xbf16>
    %cst = arith.constant dense<0.000000e+00> : vector<112x256xf32>
    %23 = tpu.matmul %20, %22, %cst {dimension_numbers = #tpu.dot_dimension_numbers<[1], [0], [0], [1], [0, 0, 1, 1], [], []>} : vector<112x64xbf16>, vector<64x256xbf16>, vector<112x256xf32> -> vector<112x256xf32>
    %24 = vector.extract_strided_slice %23 {offsets = [0, 0], sizes = [112, 128], strides = [1, 1]} : vector<112x256xf32> to vector<112x128xf32>
    %cst_9 = arith.constant 0.000000e+00 : f32
    %25 = vector.broadcast %cst_9 : f32 to vector<1x128xf32>
    %26 = vector.extract_strided_slice %24 {offsets = [0, 0], sizes = [111, 128], strides = [1, 1]} : vector<112x128xf32> to vector<111x128xf32>
    %27 = tpu.concatenate %25, %26 in 0 : vector<1x128xf32>, vector<111x128xf32> -> vector<112x128xf32>
    %c1_i32_10 = arith.constant 1 : i32
    %28 = vector.broadcast %c1_i32_10 : i32 to vector<112x1xi32>
    %29 = arith.cmpi sge, %19, %28 : vector<112x1xi32>
    %cst_11 = arith.constant 0.000000e+00 : f32
    %30 = vector.shape_cast %29 : vector<112x1xi1> to vector<112x1xi1>
    %31 = vector.broadcast %30 : vector<112x1xi1> to vector<112x128xi1>
    %32 = vector.broadcast %cst_11 : f32 to vector<112x128xf32>
    %33 = arith.select %31, %27, %32 : vector<112x128xi1>, vector<112x128xf32>
    %34 = vector.extract_strided_slice %23 {offsets = [0, 128], sizes = [112, 128], strides = [1, 1]} : vector<112x256xf32> to vector<112x128xf32>
    %35 = arith.addf %33, %34 : vector<112x128xf32>
    %36 = vector.extract_strided_slice %2 {offsets = [16, 0], sizes = [112, 64], strides = [1, 1]} : vector<128x64xbf16> to vector<112x64xbf16>
    %c1 = arith.constant 1 : index
    %c0_12 = arith.constant 0 : index
    %c0_13 = arith.constant 0 : index
    %37 = vector.load %arg2[%c1, %c0_12, %c0_13] : memref<2x64x256xbf16, #tpu.memory_space<vmem>>, vector<1x64x256xbf16>
    %38 = vector.shape_cast %37 : vector<1x64x256xbf16> to vector<64x256xbf16>
    %cst_14 = arith.constant dense<0.000000e+00> : vector<112x256xf32>
    %39 = tpu.matmul %36, %38, %cst_14 {dimension_numbers = #tpu.dot_dimension_numbers<[1], [0], [0], [1], [0, 0, 1, 1], [], []>} : vector<112x64xbf16>, vector<64x256xbf16>, vector<112x256xf32> -> vector<112x256xf32>
    %40 = vector.extract_strided_slice %39 {offsets = [0, 0], sizes = [112, 128], strides = [1, 1]} : vector<112x256xf32> to vector<112x128xf32>
    %cst_15 = arith.constant 0.000000e+00 : f32
    %41 = vector.broadcast %cst_15 : f32 to vector<1x128xf32>
    %42 = vector.extract_strided_slice %40 {offsets = [0, 0], sizes = [111, 128], strides = [1, 1]} : vector<112x128xf32> to vector<111x128xf32>
    %43 = tpu.concatenate %41, %42 in 0 : vector<1x128xf32>, vector<111x128xf32> -> vector<112x128xf32>
    %c1_i32_16 = arith.constant 1 : i32
    %44 = vector.broadcast %c1_i32_16 : i32 to vector<112x1xi32>
    %45 = arith.cmpi sge, %19, %44 : vector<112x1xi32>
    %cst_17 = arith.constant 0.000000e+00 : f32
    %46 = vector.shape_cast %45 : vector<112x1xi1> to vector<112x1xi1>
    %47 = vector.broadcast %46 : vector<112x1xi1> to vector<112x128xi1>
    %48 = vector.broadcast %cst_17 : f32 to vector<112x128xf32>
    %49 = arith.select %47, %43, %48 : vector<112x128xi1>, vector<112x128xf32>
    %50 = arith.addf %35, %49 : vector<112x128xf32>
    %51 = vector.extract_strided_slice %39 {offsets = [0, 128], sizes = [112, 128], strides = [1, 1]} : vector<112x256xf32> to vector<112x128xf32>
    %52 = arith.addf %50, %51 : vector<112x128xf32>
    %c0_18 = arith.constant 0 : index
    %c0_19 = arith.constant 0 : index
    %53 = vector.load %arg3[%c0_18, %c0_19] : memref<1x128xf32, #tpu.memory_space<vmem>>, vector<1x128xf32>
    %54 = vector.broadcast %53 : vector<1x128xf32> to vector<112x128xf32>
    %55 = arith.addf %52, %54 : vector<112x128xf32>
    %56 = vector.shape_cast %55 : vector<112x128xf32> to vector<7x16x128xf32>
    %c0_20 = arith.constant 0 : index
    %c0_21 = arith.constant 0 : index
    %c0_22 = arith.constant 0 : index
    %c0_23 = arith.constant 0 : index
    %57 = vector.load %arg4[%c0_20, %c0_21, %c0_22, %c0_23] : memref<1x21x16x128xf32, #tpu.memory_space<vmem>>, vector<1x7x16x128xf32>
    %58 = vector.shape_cast %57 : vector<1x7x16x128xf32> to vector<7x16x128xf32>
    %59 = vector.shape_cast %56 : vector<7x16x128xf32> to vector<1x7x16x128xf32>
    tpu.vector_store %arg4[%c0_20, %c0_21, %c0_22, %c0_23], %59 {strides = array<i32>} : memref<1x21x16x128xf32, #tpu.memory_space<vmem>>, vector<1x7x16x128xf32>,
    %c0_24 = arith.constant 0 : index
    %c7 = arith.constant 7 : index
    %c0_25 = arith.constant 0 : index
    %c0_26 = arith.constant 0 : index
    %60 = vector.load %arg4[%c0_24, %c7, %c0_25, %c0_26] : memref<1x21x16x128xf32, #tpu.memory_space<vmem>>, vector<1x7x16x128xf32>
    %61 = vector.shape_cast %60 : vector<1x7x16x128xf32> to vector<7x16x128xf32>
    %62 = vector.shape_cast %56 : vector<7x16x128xf32> to vector<1x7x16x128xf32>
    tpu.vector_store %arg4[%c0_24, %c7, %c0_25, %c0_26], %62 {strides = array<i32>} : memref<1x21x16x128xf32, #tpu.memory_space<vmem>>, vector<1x7x16x128xf32>,
    %c0_27 = arith.constant 0 : index
    %c14 = arith.constant 14 : index
    %c0_28 = arith.constant 0 : index
    %c0_29 = arith.constant 0 : index
    %63 = vector.load %arg4[%c0_27, %c14, %c0_28, %c0_29] : memref<1x21x16x128xf32, #tpu.memory_space<vmem>>, vector<1x7x16x128xf32>
    %64 = vector.shape_cast %63 : vector<1x7x16x128xf32> to vector<7x16x128xf32>
    %65 = vector.shape_cast %56 : vector<7x16x128xf32> to vector<1x7x16x128xf32>
    tpu.vector_store %arg4[%c0_27, %c14, %c0_28, %c0_29], %65 {strides = array<i32>} : memref<1x21x16x128xf32, #tpu.memory_space<vmem>>, vector<1x7x16x128xf32>,
    return
  }
  func.func @transform_0(%arg0: i32) -> (i32, i32, i32, i32) {
    %c0_i32 = arith.constant 0 : i32
    %c0_i32_0 = arith.constant 0 : i32
    %c0_i32_1 = arith.constant 0 : i32
    %c0_i32_2 = arith.constant 0 : i32
    return %arg0, %c0_i32, %c0_i32_0, %c0_i32_1 : i32, i32, i32, i32
  }
  func.func @transform_1(%arg0: i32) -> (i32, i32, i32) {
    %c0_i32 = arith.constant 0 : i32
    %c0_i32_0 = arith.constant 0 : i32
    %c0_i32_1 = arith.constant 0 : i32
    %c0_i32_2 = arith.constant 0 : i32
    return %c0_i32, %c0_i32_0, %c0_i32_1 : i32, i32, i32
  }
  func.func @transform_2(%arg0: i32) -> (i32, i32) {
    %c0_i32 = arith.constant 0 : i32
    %c0_i32_0 = arith.constant 0 : i32
    %c0_i32_1 = arith.constant 0 : i32
    return %c0_i32, %c0_i32_0 : i32, i32
  }
  func.func @transform_3(%arg0: i32) -> (i32, i32, i32, i32) {
    %c0_i32 = arith.constant 0 : i32
    %c0_i32_0 = arith.constant 0 : i32
    %c0_i32_1 = arith.constant 0 : i32
    %c0_i32_2 = arith.constant 0 : i32
    return %arg0, %c0_i32, %c0_i32_0, %c0_i32_1 : i32, i32, i32, i32
  }
}

</mosaic_0001>

<llo_original>
// kernel: tpu_custom_call.1
$region0: #{tpu_custom_call.1}
  #allocation0 [shape = 'u32[]', space=smem, size = 0x4, offset = 0x4, fixed_abs, tag = 'smem constant byte address 0x4 - core index']
  #allocation1 [shape = 'u32[72,128]{1,0:T(1,128)}', space=vmem, size = 0x9000, scoped, tag = 'internal scratch']
  %s0 = inlined_call_operand.hbm [shape: bf16[2,8,16,64], index: 0, kind: input, shape index: {}]
  %s1 = inlined_call_operand.hbm [shape: bf16[2,64,256], index: 1, kind: input, shape index: {}]
  %s2 = inlined_call_operand.vmem [shape: f32[1,128], index: 2, kind: input, shape index: {}]
  %s3 = inlined_call_operand.hbm [shape: f32[2,21,16,128], index: 3, kind: output, shape index: {}]
  %s4 = sld [smem:[#allocation0]]
  $region53: #{tpu_custom_call.1} parent=0
    _
  %s6 = ssub.s32 1, %s4
  %s7 = scalar_select 0, %s6, %s4
  $region1: #{tpu_custom_call.1} parent=0
    #allocation2 [shape = 'u8[65536]{0}', space=vmem, size = 0x10000, scoped, tag = 'input window, operand 0']
    #allocation3 [shape = 's32[2]{0}', space=sflag, size = 0x8, scoped, tag = 'scoped memory for tpu_custom_call.1']
    #allocation4 [shape = 's32[2]{0}', space=sflag, size = 0x8, scoped, tag = 'scoped memory for tpu_custom_call.1']
    #allocation5 [shape = 'u8[65536]{0}', space=vmem, size = 0x10000, scoped, tag = 'input window, operand 1, single buffered']
    #allocation6 [shape = 's32[1]{0}', space=sflag, size = 0x4, scoped, tag = 'scoped memory for tpu_custom_call.1']
    #allocation7 [shape = 'u8[344064]{0}', space=vmem, size = 0x54000, scoped, tag = 'output window, operand 0']
    %8 = vsyncpa [#allocation3], 0
    %s9 = scalar_lea.sflag [#allocation3], 1
    %10 = vsyncpa %s9, 0
    %11 = vsyncpa [#allocation6], 0
    %12 = vsyncpa [#allocation4], 0
    %s13 = scalar_lea.sflag [#allocation4], 1
    %14 = vsyncpa %s13, 0
    loop: start=0, step=1, limit=4
    $region2: #{tpu_custom_call.1} parent=1 // loop_pre_header
      _
    $region3: #{tpu_custom_call.1} parent=1 // loop_header
      %s16 = sphi 0, %s20
      %p17 = scmp.ge.s32.totalorder %s16, 4
      %s26 = sphi 0, %s28
      %s29 = sphi 0, %s26
      %s30 = sphi 0, %s29
      %s46 = sphi 0, %s30
      %s50 = sphi 0, %s50
      %s52 = sphi 0, %s50
      %s53 = sphi 0, %s52
      %s67 = sphi 0, %s53
      %s71 = sphi 0, %s71
      %s73 = sphi 0, %s71
      %s74 = sphi 0, %s73
      %s88 = sphi 0, %s74
      %s94 = sphi 0, %s96
      %s97 = sphi 0, %s94
      %s98 = sphi 0, %s97
      %s114 = sphi 0, %s98
    $region4: #{tpu_custom_call.1} parent=1 // loop_header_branch
      %19 = sbr.rel (%p17) target = $region8
    $region5: #{tpu_custom_call.1} parent=1 // loop_body
      %s21 = ssub.s32 %s16, 1
      %s22 = ssub.s32 %s16, 2
      %s23 = sadd.s32 %s16, 1
      %s24 = ssub.s32 %s16, %s23
      %p25 = scmp.eq.s32.totalorder %s24, 0
      %s27 = sadd.s32 %s26, 1
      %s28 = scalar_select %p25, %s26, %s27
      %p31 = pneg %p25
      %p32 = scmp.eq.s32.totalorder %s16, 1
      %p33 = por %p31, %p32
      %p34 = scmp.ne.s32.totalorder %s26, %s29
      %p35 = scmp.eq.s32.totalorder %s16, 0
      %p36 = por %p34, %p35
      %p37 = scmp.ne.s32.totalorder %s26, %s29
      %p38 = scmp.eq.s32.totalorder %s21, 1
      %p39 = por %p37, %p38
      %p40 = scmp.ne.s32.totalorder %s29, %s30
      %p41 = scmp.eq.s32.totalorder %s21, 0
      %p42 = por %p40, %p41
      %p43 = scmp.ne.s32.totalorder %s29, %s30
      %p44 = scmp.eq.s32.totalorder %s22, 1
      %p45 = por %p43, %p44
      %p47 = scmp.ne.s32.totalorder %s30, %s46
      %p48 = scmp.eq.s32.totalorder %s22, 0
      %p49 = por %p47, %p48
      %s51 = sadd.s32 %s50, 1
      %p54 = scmp.eq.s32.totalorder %s16, 1
      %p55 = scmp.ne.s32.totalorder %s50, %s52
      %p56 = scmp.eq.s32.totalorder %s16, 0
      %p57 = por %p55, %p56
      %p58 = scmp.ne.s32.totalorder %s50, %s52
      %p59 = scmp.eq.s32.totalorder %s21, 1
      %p60 = por %p58, %p59
      %p61 = scmp.ne.s32.totalorder %s52, %s53
      %p62 = scmp.eq.s32.totalorder %s21, 0
      %p63 = por %p61, %p62
      %p64 = scmp.ne.s32.totalorder %s52, %s53
      %p65 = scmp.eq.s32.totalorder %s22, 1
      %p66 = por %p64, %p65
      %p68 = scmp.ne.s32.totalorder %s53, %s67
      %p69 = scmp.eq.s32.totalorder %s22, 0
      %p70 = por %p68, %p69
      %s72 = sadd.s32 %s71, 1
      %p75 = scmp.eq.s32.totalorder %s16, 1
      %p76 = scmp.ne.s32.totalorder %s71, %s73
      %p77 = scmp.eq.s32.totalorder %s16, 0
      %p78 = por %p76, %p77
      %p79 = scmp.ne.s32.totalorder %s71, %s73
      %p80 = scmp.eq.s32.totalorder %s21, 1
      %p81 = por %p79, %p80
      %p82 = scmp.ne.s32.totalorder %s73, %s74
      %p83 = scmp.eq.s32.totalorder %s21, 0
      %p84 = por %p82, %p83
      %p85 = scmp.ne.s32.totalorder %s73, %s74
      %p86 = scmp.eq.s32.totalorder %s22, 1
      %p87 = por %p85, %p86
      %p89 = scmp.ne.s32.totalorder %s74, %s88
      %p90 = scmp.eq.s32.totalorder %s22, 0
      %p91 = por %p89, %p90
      %s92 = ssub.s32 %s16, %s23
      %p93 = scmp.eq.s32.totalorder %s92, 0
      %s95 = sadd.s32 %s94, 1
      %s96 = scalar_select %p93, %s94, %s95
      %p99 = pneg %p93
      %p100 = scmp.eq.s32.totalorder %s16, 1
      %p101 = por %p99, %p100
      %p102 = scmp.ne.s32.totalorder %s94, %s97
      %p103 = scmp.eq.s32.totalorder %s16, 0
      %p104 = por %p102, %p103
      %p105 = scmp.ne.s32.totalorder %s94, %s97
      %p106 = scmp.eq.s32.totalorder %s21, 1
      %p107 = por %p105, %p106
      %p108 = scmp.ne.s32.totalorder %s97, %s98
      %p109 = scmp.eq.s32.totalorder %s21, 0
      %p110 = por %p108, %p109
      %p111 = scmp.ne.s32.totalorder %s97, %s98
      %p112 = scmp.eq.s32.totalorder %s22, 1
      %p113 = por %p111, %p112
      %p115 = scmp.ne.s32.totalorder %s98, %s114
      %p116 = scmp.eq.s32.totalorder %s22, 0
      %p117 = por %p115, %p116
      %p118 = scmp.le.s32.totalorder 1, %s16
      %p119 = scmp.lt.s32.totalorder %s16, 3
      %p120 = pnand %p118, %p119
      %p121 = pneg %p120
      // Predicated region
      $region9: #{tpu_custom_call.1} parent=5 // pred_check
        _
      $region10: #{tpu_custom_call.1} parent=5 // pred_check_branch
        %123 = sbr.rel (%p120) target = $region12
      $region11: #{tpu_custom_call.1} parent=5 // pred_region
        %s124 = ssub.s32 %s16, 1
        // Predicated region
        $region13: #{tpu_custom_call.1} parent=11 // pred_check
          %p125 = pneg %p63
        $region14: #{tpu_custom_call.1} parent=11 // pred_check_branch
          %127 = sbr.rel (%p125) target = $region16
        $region15: #{tpu_custom_call.1} parent=11 // pred_region
          %129 = vsyncadd [#allocation6], 0
          %s130 = sshll.u32 %s1, 4
          %s131 = int_to_ptr.hbm [resolvable:$true] %s130
          %s132 = sshll.u32 [#allocation5], 4
          %s133 = int_to_ptr.vmem [resolvable:$true] %s132
          %138 = dma.hbm_to_vmem [thread:$0]  %s131, 2048, %s133, [#allocation6], 128, 128, 8
        $region16: #{tpu_custom_call.1} parent=11 // pred_fallthru
          _
        // Predicated region
        $region17: #{tpu_custom_call.1} parent=11 // pred_check
          %p139 = pneg %p84
        $region18: #{tpu_custom_call.1} parent=11 // pred_check_branch
          %141 = sbr.rel (%p139) target = $region20
        $region19: #{tpu_custom_call.1} parent=11 // pred_region
          _
        $region20: #{tpu_custom_call.1} parent=11 // pred_fallthru
          _
      $region12: #{tpu_custom_call.1} parent=5 // pred_fallthru
        _
      %p142 = scmp.lt.s32.totalorder %s16, 2
      // Predicated region
      $region21: #{tpu_custom_call.1} parent=5 // pred_check
        %p143 = pneg %p142
      $region22: #{tpu_custom_call.1} parent=5 // pred_check_branch
        %145 = sbr.rel (%p143) target = $region24
      $region23: #{tpu_custom_call.1} parent=5 // pred_region
        // Predicated region
        $region25: #{tpu_custom_call.1} parent=23 // pred_check
          %p146 = pneg %p36
        $region26: #{tpu_custom_call.1} parent=23 // pred_check_branch
          %148 = sbr.rel (%p146) target = $region28
        $region27: #{tpu_custom_call.1} parent=23 // pred_region
          %s149 = sand.u32 %s26, 1
          %s150 = scalar_lea.sflag [#allocation3], %s149
          %s151 = sand.u32 %s26, 1
          %s152 = smul.addr %s151, 64
          %s153 = scalar_lea.vmem [#allocation2], %s152
          %155 = vsyncadd %s150, 0
          %s156 = smul.addr %s16, 16
          %s157 = smul.addr %s156, 4
          %s158 = scalar_lea.hbm %s0, %s157
          %s159 = sshll.u32 %s158, 4
          %s160 = int_to_ptr.hbm [resolvable:$true] %s159
          %s161 = sshll.u32 %s153, 4
          %s162 = int_to_ptr.vmem [resolvable:$true] %s161
          %167 = dma.hbm_to_vmem [thread:$0]  %s160, 1024, %s162, %s150, 64, 64, 4
        $region28: #{tpu_custom_call.1} parent=23 // pred_fallthru
          _
      $region24: #{tpu_custom_call.1} parent=5 // pred_fallthru
        _
      %p168 = scmp.le.s32.totalorder 1, %s16
      %p169 = scmp.lt.s32.totalorder %s16, 3
      %p170 = pnand %p168, %p169
      %p171 = pneg %p170
      // Predicated region
      $region29: #{tpu_custom_call.1} parent=5 // pred_check
        _
      $region30: #{tpu_custom_call.1} parent=5 // pred_check_branch
        %173 = sbr.rel (%p170) target = $region32
      $region31: #{tpu_custom_call.1} parent=5 // pred_region
        %s174 = ssub.s32 %s16, 1
        %s175 = sand.u32 %s29, 1
        %s176 = scalar_lea.sflag [#allocation3], %s175
        %s177 = sand.u32 %s29, 1
        %s178 = smul.addr %s177, 64
        %s179 = scalar_lea.vmem [#allocation2], %s178
        // Predicated region
        $region33: #{tpu_custom_call.1} parent=31 // pred_check
          %p180 = pneg %p42
        $region34: #{tpu_custom_call.1} parent=31 // pred_check_branch
          %182 = sbr.rel (%p180) target = $region36
        $region35: #{tpu_custom_call.1} parent=31 // pred_region
          %184 = dma.done %s176, 1024
        $region36: #{tpu_custom_call.1} parent=31 // pred_fallthru
          _
        // Predicated region
        $region37: #{tpu_custom_call.1} parent=31 // pred_check
          %p185 = pneg %p63
        $region38: #{tpu_custom_call.1} parent=31 // pred_check_branch
          %187 = sbr.rel (%p185) target = $region40
        $region39: #{tpu_custom_call.1} parent=31 // pred_region
          %189 = dma.done [#allocation6], 2048
        $region40: #{tpu_custom_call.1} parent=31 // pred_fallthru
          _
        %s190 = sand.u32 %s29, 1
        %s191 = scalar_lea.sflag [#allocation3], %s190
        %s192 = sand.u32 %s29, 1
        %s193 = smul.addr %s192, 64
        %s194 = scalar_lea.vmem [#allocation2], %s193
        %p195 = pneg %p42
        %p196 = pneg %p39
        %p197 = pneg %p63
        %p198 = pneg %p60
        %p199 = pneg %p84
        %p200 = pneg %p81
        %p201 = pneg %p110
        %p202 = pneg %p107
        %s203 = sand.u32 %s97, 1
        %s204 = scalar_lea.sflag [#allocation4], %s203
        %s205 = sand.u32 %s97, 1
        %s206 = smul.addr %s205, 336
        %s207 = scalar_lea.vmem [#allocation7], %s206
        %v209 = vld [vmem:[%s179] sm:$0xf]
        %v210 = vld [vmem:[%s179 + $0x4] sm:$0xf]
        %v211 = vld [vmem:[%s179 + $0x8] sm:$0xf]
        %v212 = vld [vmem:[%s179 + $0xc] sm:$0xf]
        %v213 = vld [vmem:[%s179 + $0x10] sm:$0xf]
        %v214 = vld [vmem:[%s179 + $0x14] sm:$0xf]
        %v215 = vld [vmem:[%s179 + $0x18] sm:$0xf]
        %v216 = vld [vmem:[%s179 + $0x1c] sm:$0xf]
        %v217 = vld [vmem:[%s179 + $0x20] sm:$0xf]
        %v218 = vld [vmem:[%s179 + $0x24] sm:$0xf]
        %v219 = vld [vmem:[%s179 + $0x28] sm:$0xf]
        %v220 = vld [vmem:[%s179 + $0x2c] sm:$0xf]
        %v221 = vld [vmem:[%s179 + $0x30] sm:$0xf]
        %v222 = vld [vmem:[%s179 + $0x34] sm:$0xf]
        %v223 = vld [vmem:[%s179 + $0x38] sm:$0xf]
        %v224 = vld [vmem:[%s179 + $0x3c] sm:$0xf]
        %v225 = vlaneseq
        %v226 = vshrl.u32 %v225, 7
        %v227 = vadd.s32 %v226, 8
        %v228 = vadd.s32 %v226, 16
        %v229 = vadd.s32 %v226, 24
        %v230 = vadd.s32 %v226, 32
        %v231 = vadd.s32 %v226, 40
        %v232 = vadd.s32 %v226, 48
        %v233 = vadd.s32 %v226, 56
        %v234 = vadd.s32 %v226, 64
        %v235 = vadd.s32 %v226, 72
        %v236 = vadd.s32 %v226, 80
        %v237 = vadd.s32 %v226, 88
        %v238 = vadd.s32 %v226, 96
        %v239 = vadd.s32 %v226, 104
        %vm240 = vcmp.lt.s32.totalorder %v226, 0
        %v241 = vsub.s32 0, %v226
        %v242 = vsel %vm240, %v241, %v226
        %v243 = vshrl.u32 %v242, 4
        %v244 = vand.u32 %v242, 15
        %v245 = vsub.s32 0, %v244
        %v246 = vsel %vm240, %v245, %v244
        %vm247 = vcmp.lt.s32.totalorder %v227, 0
        %v248 = vsub.s32 0, %v227
        %v249 = vsel %vm247, %v248, %v227
        %v250 = vshrl.u32 %v249, 4
        %v251 = vand.u32 %v249, 15
        %v252 = vsub.s32 0, %v251
        %v253 = vsel %vm247, %v252, %v251
        %vm254 = vcmp.lt.s32.totalorder %v228, 0
        %v255 = vsub.s32 0, %v228
        %v256 = vsel %vm254, %v255, %v228
        %v257 = vshrl.u32 %v256, 4
        %v258 = vand.u32 %v256, 15
        %v259 = vsub.s32 0, %v258
        %v260 = vsel %vm254, %v259, %v258
        %vm261 = vcmp.lt.s32.totalorder %v229, 0
        %v262 = vsub.s32 0, %v229
        %v263 = vsel %vm261, %v262, %v229
        %v264 = vshrl.u32 %v263, 4
        %v265 = vand.u32 %v263, 15
        %v266 = vsub.s32 0, %v265
        %v267 = vsel %vm261, %v266, %v265
        %vm268 = vcmp.lt.s32.totalorder %v230, 0
        %v269 = vsub.s32 0, %v230
        %v270 = vsel %vm268, %v269, %v230
        %v271 = vshrl.u32 %v270, 4
        %v272 = vand.u32 %v270, 15
        %v273 = vsub.s32 0, %v272
        %v274 = vsel %vm268, %v273, %v272
        %vm275 = vcmp.lt.s32.totalorder %v231, 0
        %v276 = vsub.s32 0, %v231
        %v277 = vsel %vm275, %v276, %v231
        %v278 = vshrl.u32 %v277, 4
        %v279 = vand.u32 %v277, 15
        %v280 = vsub.s32 0, %v279
        %v281 = vsel %vm275, %v280, %v279
        %vm282 = vcmp.lt.s32.totalorder %v232, 0
        %v283 = vsub.s32 0, %v232
        %v284 = vsel %vm282, %v283, %v232
        %v285 = vshrl.u32 %v284, 4
        %v286 = vand.u32 %v284, 15
        %v287 = vsub.s32 0, %v286
        %v288 = vsel %vm282, %v287, %v286
        %vm289 = vcmp.lt.s32.totalorder %v233, 0
        %v290 = vsub.s32 0, %v233
        %v291 = vsel %vm289, %v290, %v233
        %v292 = vshrl.u32 %v291, 4
        %v293 = vand.u32 %v291, 15
        %v294 = vsub.s32 0, %v293
        %v295 = vsel %vm289, %v294, %v293
        %vm296 = vcmp.lt.s32.totalorder %v234, 0
        %v297 = vsub.s32 0, %v234
        %v298 = vsel %vm296, %v297, %v234
        %v299 = vshrl.u32 %v298, 4
        %v300 = vand.u32 %v298, 15
        %v301 = vsub.s32 0, %v300
        %v302 = vsel %vm296, %v301, %v300
        %vm303 = vcmp.lt.s32.totalorder %v235, 0
        %v304 = vsub.s32 0, %v235
        %v305 = vsel %vm303, %v304, %v235
        %v306 = vshrl.u32 %v305, 4
        %v307 = vand.u32 %v305, 15
        %v308 = vsub.s32 0, %v307
        %v309 = vsel %vm303, %v308, %v307
        %vm310 = vcmp.lt.s32.totalorder %v236, 0
        %v311 = vsub.s32 0, %v236
        %v312 = vsel %vm310, %v311, %v236
        %v313 = vshrl.u32 %v312, 4
        %v314 = vand.u32 %v312, 15
        %v315 = vsub.s32 0, %v314
        %v316 = vsel %vm310, %v315, %v314
        %vm317 = vcmp.lt.s32.totalorder %v237, 0
        %v318 = vsub.s32 0, %v237
        %v319 = vsel %vm317, %v318, %v237
        %v320 = vshrl.u32 %v319, 4
        %v321 = vand.u32 %v319, 15
        %v322 = vsub.s32 0, %v321
        %v323 = vsel %vm317, %v322, %v321
        %vm324 = vcmp.lt.s32.totalorder %v238, 0
        %v325 = vsub.s32 0, %v238
        %v326 = vsel %vm324, %v325, %v238
        %v327 = vshrl.u32 %v326, 4
        %v328 = vand.u32 %v326, 15
        %v329 = vsub.s32 0, %v328
        %v330 = vsel %vm324, %v329, %v328
        %vm331 = vcmp.lt.s32.totalorder %v239, 0
        %v332 = vsub.s32 0, %v239
        %v333 = vsel %vm331, %v332, %v239
        %v334 = vshrl.u32 %v333, 4
        %v335 = vand.u32 %v333, 15
        %v336 = vsub.s32 0, %v335
        %v337 = vsel %vm331, %v336, %v335
        %vm338 = vcmp.ne.s32.totalorder %v246, 0
        %vm339 = vcmp.ne.s32.totalorder %v253, 0
        %vm340 = vcmp.ne.s32.totalorder %v260, 0
        %vm341 = vcmp.ne.s32.totalorder %v267, 0
        %vm342 = vcmp.ne.s32.totalorder %v274, 0
        %vm343 = vcmp.ne.s32.totalorder %v281, 0
        %vm344 = vcmp.ne.s32.totalorder %v288, 0
        %vm345 = vcmp.ne.s32.totalorder %v295, 0
        %vm346 = vcmp.ne.s32.totalorder %v302, 0
        %vm347 = vcmp.ne.s32.totalorder %v309, 0
        %vm348 = vcmp.ne.s32.totalorder %v316, 0
        %vm349 = vcmp.ne.s32.totalorder %v323, 0
        %vm350 = vcmp.ne.s32.totalorder %v330, 0
        %vm351 = vcmp.ne.s32.totalorder %v337, 0
        %vm352 = vcmp.lt.s32.totalorder %v246, 0
        %vm353 = vcmp.lt.s32.totalorder %v253, 0
        %vm354 = vcmp.lt.s32.totalorder %v260, 0
        %vm355 = vcmp.lt.s32.totalorder %v267, 0
        %vm356 = vcmp.lt.s32.totalorder %v274, 0
        %vm357 = vcmp.lt.s32.totalorder %v281, 0
        %vm358 = vcmp.lt.s32.totalorder %v288, 0
        %vm359 = vcmp.lt.s32.totalorder %v295, 0
        %vm360 = vcmp.lt.s32.totalorder %v302, 0
        %vm361 = vcmp.lt.s32.totalorder %v309, 0
        %vm362 = vcmp.lt.s32.totalorder %v316, 0
        %vm363 = vcmp.lt.s32.totalorder %v323, 0
        %vm364 = vcmp.lt.s32.totalorder %v330, 0
        %vm365 = vcmp.lt.s32.totalorder %v337, 0
        %vm366 = vmand %vm352, %vm338
        %vm367 = vmand %vm353, %vm339
        %vm368 = vmand %vm354, %vm340
        %vm369 = vmand %vm355, %vm341
        %vm370 = vmand %vm356, %vm342
        %vm371 = vmand %vm357, %vm343
        %vm372 = vmand %vm358, %vm344
        %vm373 = vmand %vm359, %vm345
        %vm374 = vmand %vm360, %vm346
        %vm375 = vmand %vm361, %vm347
        %vm376 = vmand %vm362, %vm348
        %vm377 = vmand %vm363, %vm349
        %vm378 = vmand %vm364, %vm350
        %vm379 = vmand %vm365, %vm351
        %v380 = vadd.s32 %v246, 16
        %v381 = vadd.s32 %v253, 16
        %v382 = vadd.s32 %v260, 16
        %v383 = vadd.s32 %v267, 16
        %v384 = vadd.s32 %v274, 16
        %v385 = vadd.s32 %v281, 16
        %v386 = vadd.s32 %v288, 16
        %v387 = vadd.s32 %v295, 16
        %v388 = vadd.s32 %v302, 16
        %v389 = vadd.s32 %v309, 16
        %v390 = vadd.s32 %v316, 16
        %v391 = vadd.s32 %v323, 16
        %v392 = vadd.s32 %v330, 16
        %v393 = vadd.s32 %v337, 16
        %v394 = vsel %vm366, %v380, %v246
        %v395 = vsel %vm367, %v381, %v253
        %v396 = vsel %vm368, %v382, %v260
        %v397 = vsel %vm369, %v383, %v267
        %v398 = vsel %vm370, %v384, %v274
        %v399 = vsel %vm371, %v385, %v281
        %v400 = vsel %vm372, %v386, %v288
        %v401 = vsel %vm373, %v387, %v295
        %v402 = vsel %vm374, %v388, %v302
        %v403 = vsel %vm375, %v389, %v309
        %v404 = vsel %vm376, %v390, %v316
        %v405 = vsel %vm377, %v391, %v323
        %v406 = vsel %vm378, %v392, %v330
        %v407 = vsel %vm379, %v393, %v337
        %v408 = vld [vmem:[#allocation5] sm:$0xff]
        %v409 = vld [vmem:[#allocation5 + $0x8] sm:$0xff]
        %v410 = vld [vmem:[#allocation5 + $0x10] sm:$0xff]
        %v411 = vld [vmem:[#allocation5 + $0x18] sm:$0xff]
        %v412 = vld [vmem:[#allocation5 + $0x20] sm:$0xff]
        %v413 = vld [vmem:[#allocation5 + $0x28] sm:$0xff]
        %v414 = vld [vmem:[#allocation5 + $0x30] sm:$0xff]
        %v415 = vld [vmem:[#allocation5 + $0x38] sm:$0xff]
        %v430 = vunpack.c.l.b16 %v209
        %v431 = vunpack.c.l.b16 %v210
        %v432 = vunpack.c.l.b16 %v211
        %v433 = vunpack.c.l.b16 %v212
        %v434 = vunpack.c.l.b16 %v213
        %v435 = vunpack.c.l.b16 %v214
        %v436 = vunpack.c.l.b16 %v215
        %v437 = vunpack.c.l.b16 %v216
        %v438 = vunpack.c.l.b16 %v217
        %v439 = vunpack.c.l.b16 %v218
        %v440 = vunpack.c.l.b16 %v219
        %v441 = vunpack.c.l.b16 %v220
        %v442 = vunpack.c.l.b16 %v221
        %v443 = vunpack.c.l.b16 %v222
        %v444 = vpack.c.b16 %v431, %v430
        %v445 = vpack.c.b16 %v433, %v432
        %v446 = vpack.c.b16 %v435, %v434
        %v447 = vpack.c.b16 %v437, %v436
        %v448 = vpack.c.b16 %v439, %v438
        %v449 = vpack.c.b16 %v441, %v440
        %v450 = vpack.c.b16 %v443, %v442
        %v459 = vunpack.c.l.b16 %v408
        %v460 = vunpack.c.h.b16 %v408
        %v461 = vunpack.c.l.b16 %v409
        %v462 = vunpack.c.h.b16 %v409
        %v463 = vunpack.c.l.b16 %v410
        %v464 = vunpack.c.h.b16 %v410
        %v465 = vunpack.c.l.b16 %v411
        %v466 = vunpack.c.h.b16 %v411
        %v467 = vunpack.c.l.b16 %v412
        %v468 = vunpack.c.h.b16 %v412
        %v469 = vunpack.c.l.b16 %v413
        %v470 = vunpack.c.h.b16 %v413
        %v471 = vunpack.c.l.b16 %v414
        %v472 = vunpack.c.h.b16 %v414
        %v473 = vunpack.c.l.b16 %v415
        %v474 = vunpack.c.h.b16 %v415
        %v475 = vpack.c.b16 %v461, %v459
        %v476 = vpack.c.b16 %v462, %v460
        %v477 = vpack.c.b16 %v465, %v463
        %v478 = vpack.c.b16 %v466, %v464
        %v479 = vpack.c.b16 %v469, %v467
        %v480 = vpack.c.b16 %v470, %v468
        %v481 = vpack.c.b16 %v473, %v471
        %v482 = vpack.c.b16 %v474, %v472
        %vm491 = vcmask 523264
        %v493 = vsel %vm491, %v444, 0
        %v496 = vsel %vm491, %v445, 0
        %v499 = vsel %vm491, %v446, 0
        %v502 = vsel %vm491, %v447, 0
        %v505 = vsel %vm491, %v448, 0
        %v508 = vsel %vm491, %v449, 0
        %v511 = vsel %vm491, %v450, 0
        %513 = vmatpush.bf16.msra.mxu0 0
        %514 = vmatpush.bf16.msra.mxu0 0
        %515 = vmatpush.bf16.msra.mxu0 0
        %516 = vmatpush.bf16.msra.mxu0 0
        %517 = vmatpush.bf16.msra.mxu0 %v481
        %518 = vmatpush.bf16.msra.mxu0 %v479
        %519 = vmatpush.bf16.msra.mxu0 %v477
        %520 = vmatpush.bf16.msra.mxu0 %v475
        %521 = vmatmul.bf16.gmra.mxu0 %v493
        %v522 = vpop.f32.mrf.mxu0
        %v523 = vadd.f32 0.0, %v522
        %v524 = vpop.f32.mrf.mxu0
        %v525 = vadd.f32 0.0, %v524
        %526 = vmatmul.bf16.gmra.mxu0 %v496
        %v527 = vpop.f32.mrf.mxu0
        %v528 = vadd.f32 0.0, %v527
        %v529 = vpop.f32.mrf.mxu0
        %v530 = vadd.f32 0.0, %v529
        %531 = vmatmul.bf16.gmra.mxu0 %v499
        %v532 = vpop.f32.mrf.mxu0
        %v533 = vadd.f32 0.0, %v532
        %v534 = vpop.f32.mrf.mxu0
        %v535 = vadd.f32 0.0, %v534
        %536 = vmatmul.bf16.gmra.mxu0 %v502
        %v537 = vpop.f32.mrf.mxu0
        %v538 = vadd.f32 0.0, %v537
        %v539 = vpop.f32.mrf.mxu0
        %v540 = vadd.f32 0.0, %v539
        %541 = vmatmul.bf16.gmra.mxu0 %v505
        %v542 = vpop.f32.mrf.mxu0
        %v543 = vadd.f32 0.0, %v542
        %v544 = vpop.f32.mrf.mxu0
        %v545 = vadd.f32 0.0, %v544
        %546 = vmatmul.bf16.gmra.mxu0 %v508
        %v547 = vpop.f32.mrf.mxu0
        %v548 = vadd.f32 0.0, %v547
        %v549 = vpop.f32.mrf.mxu0
        %v550 = vadd.f32 0.0, %v549
        %551 = vmatmul.bf16.gmra.mxu0 %v511
        %v552 = vpop.f32.mrf.mxu0
        %v553 = vadd.f32 0.0, %v552
        %v554 = vpop.f32.mrf.mxu0
        %v555 = vadd.f32 0.0, %v554
        %556 = vdwg.mxu0
        %557 = vmatpush.bf16.msra.mxu0 0
        %558 = vmatpush.bf16.msra.mxu0 0
        %559 = vmatpush.bf16.msra.mxu0 0
        %560 = vmatpush.bf16.msra.mxu0 0
        %561 = vmatpush.bf16.msra.mxu0 %v482
        %562 = vmatpush.bf16.msra.mxu0 %v480
        %563 = vmatpush.bf16.msra.mxu0 %v478
        %564 = vmatpush.bf16.msra.mxu0 %v476
        %565 = vmatmul.bf16.gmra.mxu0 %v493
        %v566 = vpop.f32.mrf.mxu0
        %v567 = vadd.f32 0.0, %v566
        %v568 = vpop.f32.mrf.mxu0
        %v569 = vadd.f32 0.0, %v568
        %570 = vmatmul.bf16.gmra.mxu0 %v496
        %v571 = vpop.f32.mrf.mxu0
        %v572 = vadd.f32 0.0, %v571
        %v573 = vpop.f32.mrf.mxu0
        %v574 = vadd.f32 0.0, %v573
        %575 = vmatmul.bf16.gmra.mxu0 %v499
        %v576 = vpop.f32.mrf.mxu0
        %v577 = vadd.f32 0.0, %v576
        %v578 = vpop.f32.mrf.mxu0
        %v579 = vadd.f32 0.0, %v578
        %580 = vmatmul.bf16.gmra.mxu0 %v502
        %v581 = vpop.f32.mrf.mxu0
        %v582 = vadd.f32 0.0, %v581
        %v583 = vpop.f32.mrf.mxu0
        %v584 = vadd.f32 0.0, %v583
        %585 = vmatmul.bf16.gmra.mxu0 %v505
        %v586 = vpop.f32.mrf.mxu0
        %v587 = vadd.f32 0.0, %v586
        %v588 = vpop.f32.mrf.mxu0
        %v589 = vadd.f32 0.0, %v588
        %590 = vmatmul.bf16.gmra.mxu0 %v508
        %v591 = vpop.f32.mrf.mxu0
        %v592 = vadd.f32 0.0, %v591
        %v593 = vpop.f32.mrf.mxu0
        %v594 = vadd.f32 0.0, %v593
        %595 = vmatmul.bf16.gmra.mxu0 %v511
        %v596 = vpop.f32.mrf.mxu0
        %v597 = vadd.f32 0.0, %v596
        %v598 = vpop.f32.mrf.mxu0
        %v599 = vadd.f32 0.0, %v598
        %600 = vdwg.mxu0
        %vm615 = vcmask 1040384
        %v616 = vrot.slane %v523, 7
        %v617 = vrot.slane %v525, 7
        %v618 = vsel %vm615, %v616, %v617
        %v619 = vrot.slane %v528, 7
        %v620 = vsel %vm615, %v617, %v619
        %v621 = vrot.slane %v530, 7
        %v622 = vsel %vm615, %v619, %v621
        %v623 = vrot.slane %v533, 7
        %v624 = vsel %vm615, %v621, %v623
        %v625 = vrot.slane %v535, 7
        %v626 = vsel %vm615, %v623, %v625
        %v627 = vrot.slane %v538, 7
        %v628 = vsel %vm615, %v625, %v627
        %v629 = vrot.slane %v540, 7
        %v630 = vsel %vm615, %v627, %v629
        %v631 = vrot.slane %v543, 7
        %v632 = vsel %vm615, %v629, %v631
        %v633 = vrot.slane %v545, 7
        %v634 = vsel %vm615, %v631, %v633
        %v635 = vrot.slane %v548, 7
        %v636 = vsel %vm615, %v633, %v635
        %v637 = vrot.slane %v550, 7
        %v638 = vsel %vm615, %v635, %v637
        %v639 = vrot.slane %v553, 7
        %v640 = vsel %vm615, %v637, %v639
        %v641 = vrot.slane %v555, 7
        %v642 = vsel %vm615, %v639, %v641
        %v657 = vsel %vm615, 0.0, %v616
        %vm658 = vcmp.ge.s32.totalorder %v394, 1
        %vm659 = vcmp.ge.s32.totalorder %v395, 1
        %vm660 = vcmp.ge.s32.totalorder %v396, 1
        %vm661 = vcmp.ge.s32.totalorder %v397, 1
        %vm662 = vcmp.ge.s32.totalorder %v398, 1
        %vm663 = vcmp.ge.s32.totalorder %v399, 1
        %vm664 = vcmp.ge.s32.totalorder %v400, 1
        %vm665 = vcmp.ge.s32.totalorder %v401, 1
        %vm666 = vcmp.ge.s32.totalorder %v402, 1
        %vm667 = vcmp.ge.s32.totalorder %v403, 1
        %vm668 = vcmp.ge.s32.totalorder %v404, 1
        %vm669 = vcmp.ge.s32.totalorder %v405, 1
        %vm670 = vcmp.ge.s32.totalorder %v406, 1
        %vm671 = vcmp.ge.s32.totalorder %v407, 1
        %v672 = vsel %vm658, 1, 0
        %v673 = vsel %vm659, 1, 0
        %v674 = vsel %vm660, 1, 0
        %v675 = vsel %vm661, 1, 0
        %v676 = vsel %vm662, 1, 0
        %v677 = vsel %vm663, 1, 0
        %v678 = vsel %vm664, 1, 0
        %v679 = vsel %vm665, 1, 0
        %v680 = vsel %vm666, 1, 0
        %v681 = vsel %vm667, 1, 0
        %v682 = vsel %vm668, 1, 0
        %v683 = vsel %vm669, 1, 0
        %v684 = vsel %vm670, 1, 0
        %v685 = vsel %vm671, 1, 0
        %vm686 = vcmp.eq.s32.totalorder %v672, 1
        %vm687 = vcmp.eq.s32.totalorder %v673, 1
        %vm688 = vcmp.eq.s32.totalorder %v674, 1
        %vm689 = vcmp.eq.s32.totalorder %v675, 1
        %vm690 = vcmp.eq.s32.totalorder %v676, 1
        %vm691 = vcmp.eq.s32.totalorder %v677, 1
        %vm692 = vcmp.eq.s32.totalorder %v678, 1
        %vm693 = vcmp.eq.s32.totalorder %v679, 1
        %vm694 = vcmp.eq.s32.totalorder %v680, 1
        %vm695 = vcmp.eq.s32.totalorder %v681, 1
        %vm696 = vcmp.eq.s32.totalorder %v682, 1
        %vm697 = vcmp.eq.s32.totalorder %v683, 1
        %vm698 = vcmp.eq.s32.totalorder %v684, 1
        %vm699 = vcmp.eq.s32.totalorder %v685, 1
        %v700 = vsel %vm686, %v657, 0.0
        %v701 = vsel %vm687, %v618, 0.0
        %v702 = vsel %vm688, %v620, 0.0
        %v703 = vsel %vm689, %v622, 0.0
        %v704 = vsel %vm690, %v624, 0.0
        %v705 = vsel %vm691, %v626, 0.0
        %v706 = vsel %vm692, %v628, 0.0
        %v707 = vsel %vm693, %v630, 0.0
        %v708 = vsel %vm694, %v632, 0.0
        %v709 = vsel %vm695, %v634, 0.0
        %v710 = vsel %vm696, %v636, 0.0
        %v711 = vsel %vm697, %v638, 0.0
        %v712 = vsel %vm698, %v640, 0.0
        %v713 = vsel %vm699, %v642, 0.0
        %v714 = vadd.f32 %v700, %v567
        %v715 = vadd.f32 %v701, %v569
        %v716 = vadd.f32 %v702, %v572
        %v717 = vadd.f32 %v703, %v574
        %v718 = vadd.f32 %v704, %v577
        %v719 = vadd.f32 %v705, %v579
        %v720 = vadd.f32 %v706, %v582
        %v721 = vadd.f32 %v707, %v584
        %v722 = vadd.f32 %v708, %v587
        %v723 = vadd.f32 %v709, %v589
        %v724 = vadd.f32 %v710, %v592
        %v725 = vadd.f32 %v711, %v594
        %v726 = vadd.f32 %v712, %v597
        %v727 = vadd.f32 %v713, %v599
        %s728 = scalar_lea.vmem [#allocation5], 64
        %v729 = vld [vmem:[%s728] sm:$0xff]
        %v730 = vld [vmem:[%s728 + $0x8] sm:$0xff]
        %v731 = vld [vmem:[%s728 + $0x10] sm:$0xff]
        %v732 = vld [vmem:[%s728 + $0x18] sm:$0xff]
        %v733 = vld [vmem:[%s728 + $0x20] sm:$0xff]
        %v734 = vld [vmem:[%s728 + $0x28] sm:$0xff]
        %v735 = vld [vmem:[%s728 + $0x30] sm:$0xff]
        %v736 = vld [vmem:[%s728 + $0x38] sm:$0xff]
        %v739 = vunpack.c.l.b16 %v223
        %v740 = vunpack.c.l.b16 %v224
        %v741 = vpack.c.b16 %v740, %v739
        %v750 = vunpack.c.l.b16 %v729
        %v751 = vunpack.c.h.b16 %v729
        %v752 = vunpack.c.l.b16 %v730
        %v753 = vunpack.c.h.b16 %v730
        %v754 = vunpack.c.l.b16 %v731
        %v755 = vunpack.c.h.b16 %v731
        %v756 = vunpack.c.l.b16 %v732
        %v757 = vunpack.c.h.b16 %v732
        %v758 = vunpack.c.l.b16 %v733
        %v759 = vunpack.c.h.b16 %v733
        %v760 = vunpack.c.l.b16 %v734
        %v761 = vunpack.c.h.b16 %v734
        %v762 = vunpack.c.l.b16 %v735
        %v763 = vunpack.c.h.b16 %v735
        %v764 = vunpack.c.l.b16 %v736
        %v765 = vunpack.c.h.b16 %v736
        %v766 = vpack.c.b16 %v752, %v750
        %v767 = vpack.c.b16 %v753, %v751
        %v768 = vpack.c.b16 %v756, %v754
        %v769 = vpack.c.b16 %v757, %v755
        %v770 = vpack.c.b16 %v760, %v758
        %v771 = vpack.c.b16 %v761, %v759
        %v772 = vpack.c.b16 %v764, %v762
        %v773 = vpack.c.b16 %v765, %v763
        %v783 = vsel %vm491, %v741, 0
        %785 = vmatpush.bf16.msra.mxu0 0
        %786 = vmatpush.bf16.msra.mxu0 0
        %787 = vmatpush.bf16.msra.mxu0 0
        %788 = vmatpush.bf16.msra.mxu0 0
        %789 = vmatpush.bf16.msra.mxu0 %v772
        %790 = vmatpush.bf16.msra.mxu0 %v770
        %791 = vmatpush.bf16.msra.mxu0 %v768
        %792 = vmatpush.bf16.msra.mxu0 %v766
        %793 = vmatmul.bf16.gmra.mxu0 %v496
        %v794 = vpop.f32.mrf.mxu0
        %v795 = vadd.f32 0.0, %v794
        %v796 = vpop.f32.mrf.mxu0
        %v797 = vadd.f32 0.0, %v796
        %798 = vmatmul.bf16.gmra.mxu0 %v499
        %v799 = vpop.f32.mrf.mxu0
        %v800 = vadd.f32 0.0, %v799
        %v801 = vpop.f32.mrf.mxu0
        %v802 = vadd.f32 0.0, %v801
        %803 = vmatmul.bf16.gmra.mxu0 %v502
        %v804 = vpop.f32.mrf.mxu0
        %v805 = vadd.f32 0.0, %v804
        %v806 = vpop.f32.mrf.mxu0
        %v807 = vadd.f32 0.0, %v806
        %808 = vmatmul.bf16.gmra.mxu0 %v505
        %v809 = vpop.f32.mrf.mxu0
        %v810 = vadd.f32 0.0, %v809
        %v811 = vpop.f32.mrf.mxu0
        %v812 = vadd.f32 0.0, %v811
        %813 = vmatmul.bf16.gmra.mxu0 %v508
        %v814 = vpop.f32.mrf.mxu0
        %v815 = vadd.f32 0.0, %v814
        %v816 = vpop.f32.mrf.mxu0
        %v817 = vadd.f32 0.0, %v816
        %818 = vmatmul.bf16.gmra.mxu0 %v511
        %v819 = vpop.f32.mrf.mxu0
        %v820 = vadd.f32 0.0, %v819
        %v821 = vpop.f32.mrf.mxu0
        %v822 = vadd.f32 0.0, %v821
        %823 = vmatmul.bf16.gmra.mxu0 %v783
        %v824 = vpop.f32.mrf.mxu0
        %v825 = vadd.f32 0.0, %v824
        %v826 = vpop.f32.mrf.mxu0
        %v827 = vadd.f32 0.0, %v826
        %828 = vdwg.mxu0
        %829 = vmatpush.bf16.msra.mxu0 0
        %830 = vmatpush.bf16.msra.mxu0 0
        %831 = vmatpush.bf16.msra.mxu0 0
        %832 = vmatpush.bf16.msra.mxu0 0
        %833 = vmatpush.bf16.msra.mxu0 %v773
        %834 = vmatpush.bf16.msra.mxu0 %v771
        %835 = vmatpush.bf16.msra.mxu0 %v769
        %836 = vmatpush.bf16.msra.mxu0 %v767
        %837 = vmatmul.bf16.gmra.mxu0 %v496
        %v838 = vpop.f32.mrf.mxu0
        %v839 = vadd.f32 0.0, %v838
        %v840 = vpop.f32.mrf.mxu0
        %v841 = vadd.f32 0.0, %v840
        %842 = vmatmul.bf16.gmra.mxu0 %v499
        %v843 = vpop.f32.mrf.mxu0
        %v844 = vadd.f32 0.0, %v843
        %v845 = vpop.f32.mrf.mxu0
        %v846 = vadd.f32 0.0, %v845
        %847 = vmatmul.bf16.gmra.mxu0 %v502
        %v848 = vpop.f32.mrf.mxu0
        %v849 = vadd.f32 0.0, %v848
        %v850 = vpop.f32.mrf.mxu0
        %v851 = vadd.f32 0.0, %v850
        %852 = vmatmul.bf16.gmra.mxu0 %v505
        %v853 = vpop.f32.mrf.mxu0
        %v854 = vadd.f32 0.0, %v853
        %v855 = vpop.f32.mrf.mxu0
        %v856 = vadd.f32 0.0, %v855
        %857 = vmatmul.bf16.gmra.mxu0 %v508
        %v858 = vpop.f32.mrf.mxu0
        %v859 = vadd.f32 0.0, %v858
        %v860 = vpop.f32.mrf.mxu0
        %v861 = vadd.f32 0.0, %v860
        %862 = vmatmul.bf16.gmra.mxu0 %v511
        %v863 = vpop.f32.mrf.mxu0
        %v864 = vadd.f32 0.0, %v863
        %v865 = vpop.f32.mrf.mxu0
        %v866 = vadd.f32 0.0, %v865
        %867 = vmatmul.bf16.gmra.mxu0 %v783
        %v868 = vpop.f32.mrf.mxu0
        %v869 = vadd.f32 0.0, %v868
        %v870 = vpop.f32.mrf.mxu0
        %v871 = vadd.f32 0.0, %v870
        %872 = vdwg.mxu0
        %v887 = vrot.slane %v795, 7
        %v888 = vrot.slane %v797, 7
        %v889 = vsel %vm615, %v887, %v888
        %v890 = vrot.slane %v800, 7
        %v891 = vsel %vm615, %v888, %v890
        %v892 = vrot.slane %v802, 7
        %v893 = vsel %vm615, %v890, %v892
        %v894 = vrot.slane %v805, 7
        %v895 = vsel %vm615, %v892, %v894
        %v896 = vrot.slane %v807, 7
        %v897 = vsel %vm615, %v894, %v896
        %v898 = vrot.slane %v810, 7
        %v899 = vsel %vm615, %v896, %v898
        %v900 = vrot.slane %v812, 7
        %v901 = vsel %vm615, %v898, %v900
        %v902 = vrot.slane %v815, 7
        %v903 = vsel %vm615, %v900, %v902
        %v904 = vrot.slane %v817, 7
        %v905 = vsel %vm615, %v902, %v904
        %v906 = vrot.slane %v820, 7
        %v907 = vsel %vm615, %v904, %v906
        %v908 = vrot.slane %v822, 7
        %v909 = vsel %vm615, %v906, %v908
        %v910 = vrot.slane %v825, 7
        %v911 = vsel %vm615, %v908, %v910
        %v912 = vrot.slane %v827, 7
        %v913 = vsel %vm615, %v910, %v912
        %v928 = vsel %vm615, 0.0, %v887
        %v929 = vsel %vm686, %v928, 0.0
        %v930 = vsel %vm687, %v889, 0.0
        %v931 = vsel %vm688, %v891, 0.0
        %v932 = vsel %vm689, %v893, 0.0
        %v933 = vsel %vm690, %v895, 0.0
        %v934 = vsel %vm691, %v897, 0.0
        %v935 = vsel %vm692, %v899, 0.0
        %v936 = vsel %vm693, %v901, 0.0
        %v937 = vsel %vm694, %v903, 0.0
        %v938 = vsel %vm695, %v905, 0.0
        %v939 = vsel %vm696, %v907, 0.0
        %v940 = vsel %vm697, %v909, 0.0
        %v941 = vsel %vm698, %v911, 0.0
        %v942 = vsel %vm699, %v913, 0.0
        %v943 = vadd.f32 %v714, %v929
        %v944 = vadd.f32 %v715, %v930
        %v945 = vadd.f32 %v716, %v931
        %v946 = vadd.f32 %v717, %v932
        %v947 = vadd.f32 %v718, %v933
        %v948 = vadd.f32 %v719, %v934
        %v949 = vadd.f32 %v720, %v935
        %v950 = vadd.f32 %v721, %v936
        %v951 = vadd.f32 %v722, %v937
        %v952 = vadd.f32 %v723, %v938
        %v953 = vadd.f32 %v724, %v939
        %v954 = vadd.f32 %v725, %v940
        %v955 = vadd.f32 %v726, %v941
        %v956 = vadd.f32 %v727, %v942
        %v957 = vadd.f32 %v943, %v839
        %v958 = vadd.f32 %v944, %v841
        %v959 = vadd.f32 %v945, %v844
        %v960 = vadd.f32 %v946, %v846
        %v961 = vadd.f32 %v947, %v849
        %v962 = vadd.f32 %v948, %v851
        %v963 = vadd.f32 %v949, %v854
        %v964 = vadd.f32 %v950, %v856
        %v965 = vadd.f32 %v951, %v859
        %v966 = vadd.f32 %v952, %v861
        %v967 = vadd.f32 %v953, %v864
        %v968 = vadd.f32 %v954, %v866
        %v969 = vadd.f32 %v955, %v869
        %v970 = vadd.f32 %v956, %v871
        %v971 = vld [vmem:[%s2] sm:$0x1]
        %v973 = vperm.slane %v971, 0
        %v975 = vadd.f32 %v957, %v973
        %v976 = vadd.f32 %v958, %v973
        %v977 = vadd.f32 %v959, %v973
        %v978 = vadd.f32 %v960, %v973
        %v979 = vadd.f32 %v961, %v973
        %v980 = vadd.f32 %v962, %v973
        %v981 = vadd.f32 %v963, %v973
        %v982 = vadd.f32 %v964, %v973
        %v983 = vadd.f32 %v965, %v973
        %v984 = vadd.f32 %v966, %v973
        %v985 = vadd.f32 %v967, %v973
        %v986 = vadd.f32 %v968, %v973
        %v987 = vadd.f32 %v969, %v973
        %v988 = vadd.f32 %v970, %v973
        %989 = vst [vmem:[%s207] sm:$0xff] %v975
        %990 = vst [vmem:[%s207 + $0x8] sm:$0xff] %v976
        %991 = vst [vmem:[%s207 + $0x10] sm:$0xff] %v977
        %992 = vst [vmem:[%s207 + $0x18] sm:$0xff] %v978
        %993 = vst [vmem:[%s207 + $0x20] sm:$0xff] %v979
        %994 = vst [vmem:[%s207 + $0x28] sm:$0xff] %v980
        %995 = vst [vmem:[%s207 + $0x30] sm:$0xff] %v981
        %996 = vst [vmem:[%s207 + $0x38] sm:$0xff] %v982
        %997 = vst [vmem:[%s207 + $0x40] sm:$0xff] %v983
        %998 = vst [vmem:[%s207 + $0x48] sm:$0xff] %v984
        %999 = vst [vmem:[%s207 + $0x50] sm:$0xff] %v985
        %1000 = vst [vmem:[%s207 + $0x58] sm:$0xff] %v986
        %1001 = vst [vmem:[%s207 + $0x60] sm:$0xff] %v987
        %1002 = vst [vmem:[%s207 + $0x68] sm:$0xff] %v988
        %s1003 = scalar_lea.vmem %s207, 112 [#allocation7]
        %1004 = vst [vmem:[%s1003] sm:$0xff] %v975
        %1005 = vst [vmem:[%s1003 + $0x8] sm:$0xff] %v976
        %1006 = vst [vmem:[%s1003 + $0x10] sm:$0xff] %v977
        %1007 = vst [vmem:[%s1003 + $0x18] sm:$0xff] %v978
        %1008 = vst [vmem:[%s1003 + $0x20] sm:$0xff] %v979
        %1009 = vst [vmem:[%s1003 + $0x28] sm:$0xff] %v980
        %1010 = vst [vmem:[%s1003 + $0x30] sm:$0xff] %v981
        %1011 = vst [vmem:[%s1003 + $0x38] sm:$0xff] %v982
        %1012 = vst [vmem:[%s1003 + $0x40] sm:$0xff] %v983
        %1013 = vst [vmem:[%s1003 + $0x48] sm:$0xff] %v984
        %1014 = vst [vmem:[%s1003 + $0x50] sm:$0xff] %v985
        %1015 = vst [vmem:[%s1003 + $0x58] sm:$0xff] %v986
        %1016 = vst [vmem:[%s1003 + $0x60] sm:$0xff] %v987
        %1017 = vst [vmem:[%s1003 + $0x68] sm:$0xff] %v988
        %s1018 = scalar_lea.vmem %s207, 224 [#allocation7]
        %1019 = vst [vmem:[%s1018] sm:$0xff] %v975
        %1020 = vst [vmem:[%s1018 + $0x8] sm:$0xff] %v976
        %1021 = vst [vmem:[%s1018 + $0x10] sm:$0xff] %v977
        %1022 = vst [vmem:[%s1018 + $0x18] sm:$0xff] %v978
        %1023 = vst [vmem:[%s1018 + $0x20] sm:$0xff] %v979
        %1024 = vst [vmem:[%s1018 + $0x28] sm:$0xff] %v980
        %1025 = vst [vmem:[%s1018 + $0x30] sm:$0xff] %v981
        %1026 = vst [vmem:[%s1018 + $0x38] sm:$0xff] %v982
        %1027 = vst [vmem:[%s1018 + $0x40] sm:$0xff] %v983
        %1028 = vst [vmem:[%s1018 + $0x48] sm:$0xff] %v984
        %1029 = vst [vmem:[%s1018 + $0x50] sm:$0xff] %v985
        %1030 = vst [vmem:[%s1018 + $0x58] sm:$0xff] %v986
        %1031 = vst [vmem:[%s1018 + $0x60] sm:$0xff] %v987
        %1032 = vst [vmem:[%s1018 + $0x68] sm:$0xff] %v988
        %s1033 = sand.u32 %s97, 1
        %s1034 = scalar_lea.sflag [#allocation4], %s1033
        %s1035 = sand.u32 %s97, 1
        %s1036 = smul.addr %s1035, 336
        %s1037 = scalar_lea.vmem [#allocation7], %s1036
        // Predicated region
        $region41: #{tpu_custom_call.1} parent=31 // pred_check
          %p1038 = pneg %p107
        $region42: #{tpu_custom_call.1} parent=31 // pred_check_branch
          %1040 = sbr.rel (%p1038) target = $region44
        $region43: #{tpu_custom_call.1} parent=31 // pred_region
          %1042 = vsyncadd %s1034, 0
          %s1043 = smul.addr %s21, 42
          %s1044 = smul.addr %s1043, 8
          %s1045 = scalar_lea.hbm %s3, %s1044
          %s1046 = sshll.u32 %s1037, 4
          %s1047 = int_to_ptr.vmem [resolvable:$true] %s1046
          %s1048 = sshll.u32 %s1045, 4
          %s1049 = int_to_ptr.hbm [resolvable:$true] %s1048
          %1054 = dma.vmem_to_hbm [thread:$0]  %s1047, 5376, %s1049, %s1034, 128, 128, 8
        $region44: #{tpu_custom_call.1} parent=31 // pred_fallthru
          _
      $region32: #{tpu_custom_call.1} parent=5 // pred_fallthru
        _
      %p1055 = scmp.le.s32.totalorder 2, %s16
      // Predicated region
      $region45: #{tpu_custom_call.1} parent=5 // pred_check
        %p1056 = pneg %p1055
      $region46: #{tpu_custom_call.1} parent=5 // pred_check_branch
        %1058 = sbr.rel (%p1056) target = $region48
      $region47: #{tpu_custom_call.1} parent=5 // pred_region
        %s1059 = ssub.s32 %s16, 2
        // Predicated region
        $region49: #{tpu_custom_call.1} parent=47 // pred_check
          %p1060 = pneg %p113
        $region50: #{tpu_custom_call.1} parent=47 // pred_check_branch
          %1062 = sbr.rel (%p1060) target = $region52
        $region51: #{tpu_custom_call.1} parent=47 // pred_region
          %s1063 = sand.u32 %s98, 1
          %s1064 = scalar_lea.sflag [#allocation4], %s1063
          %s1065 = sand.u32 %s98, 1
          %s1066 = smul.addr %s1065, 336
          %s1067 = scalar_lea.vmem [#allocation7], %s1066
          %1069 = dma.done %s1064, 5376
        $region52: #{tpu_custom_call.1} parent=47 // pred_fallthru
          _
      $region48: #{tpu_custom_call.1} parent=5 // pred_fallthru
        _
    $region6: #{tpu_custom_call.1} parent=1 // loop_footer
      %s20 = sadd.s32 1, %s16
    $region7: #{tpu_custom_call.1} parent=1 // loop_footer_branch
      %15 = sbr.rel target = $region3
    $region8: #{tpu_custom_call.1} parent=1 // loop_exit
      _
    %1070 = vsyncpa [#allocation3], 1
    %s1071 = scalar_lea.sflag [#allocation3], 1
    %1072 = vsyncpa %s1071, 1
    %1073 = vsyncpa [#allocation6], 1
    %1074 = vsyncpa [#allocation4], 1
    %s1075 = scalar_lea.sflag [#allocation4], 1
    %1076 = vsyncpa %s1075, 1

// kernel: tpu_custom_call.1
$region0: #{tpu_custom_call.1}
  #allocation0 [shape = 'u32[]', space=smem, size = 0x4, offset = 0x4, fixed_abs, tag = 'smem constant byte address 0x4 - core index']
  #allocation1 [shape = 'u32[72,128]{1,0:T(1,128)}', space=vmem, size = 0x9000, scoped, tag = 'internal scratch']
  %s0 = inlined_call_operand.hbm [shape: bf16[2,8,16,64], index: 0, kind: input, shape index: {}]
  %s1 = inlined_call_operand.hbm [shape: bf16[2,64,256], index: 1, kind: input, shape index: {}]
  %s2 = inlined_call_operand.vmem [shape: f32[1,128], index: 2, kind: input, shape index: {}]
  %s3 = inlined_call_operand.hbm [shape: f32[2,21,16,128], index: 3, kind: output, shape index: {}]
  %s4 = sld [smem:[#allocation0]]
  $region53: #{tpu_custom_call.1} parent=0
    _
  %s6 = ssub.s32 1, %s4
  %s7 = scalar_select 0, %s6, %s4
  $region1: #{tpu_custom_call.1} parent=0
    #allocation2 [shape = 'u8[65536]{0}', space=vmem, size = 0x10000, scoped, tag = 'input window, operand 0']
    #allocation3 [shape = 's32[2]{0}', space=sflag, size = 0x8, scoped, tag = 'scoped memory for tpu_custom_call.1']
    #allocation4 [shape = 's32[2]{0}', space=sflag, size = 0x8, scoped, tag = 'scoped memory for tpu_custom_call.1']
    #allocation5 [shape = 'u8[65536]{0}', space=vmem, size = 0x10000, scoped, tag = 'input window, operand 1, single buffered']
    #allocation6 [shape = 's32[1]{0}', space=sflag, size = 0x4, scoped, tag = 'scoped memory for tpu_custom_call.1']
    #allocation7 [shape = 'u8[344064]{0}', space=vmem, size = 0x54000, scoped, tag = 'output window, operand 0']
    %8 = vsyncpa [#allocation3], 0
    %s9 = scalar_lea.sflag [#allocation3], 1
    %10 = vsyncpa %s9, 0
    %11 = vsyncpa [#allocation6], 0
    %12 = vsyncpa [#allocation4], 0
    %s13 = scalar_lea.sflag [#allocation4], 1
    %14 = vsyncpa %s13, 0
    loop: start=0, step=1, limit=4
    $region2: #{tpu_custom_call.1} parent=1 // loop_pre_header
      _
    $region3: #{tpu_custom_call.1} parent=1 // loop_header
      %s16 = sphi 0, %s20
      %p17 = scmp.ge.s32.totalorder %s16, 4
      %s26 = sphi 0, %s28
      %s29 = sphi 0, %s26
      %s30 = sphi 0, %s29
      %s46 = sphi 0, %s30
      %s50 = sphi 0, %s50
      %s52 = sphi 0, %s50
      %s53 = sphi 0, %s52
      %s67 = sphi 0, %s53
      %s71 = sphi 0, %s71
      %s73 = sphi 0, %s71
      %s74 = sphi 0, %s73
      %s88 = sphi 0, %s74
      %s94 = sphi 0, %s96
      %s97 = sphi 0, %s94
      %s98 = sphi 0, %s97
      %s114 = sphi 0, %s98
    $region4: #{tpu_custom_call.1} parent=1 // loop_header_branch
      %19 = sbr.rel (%p17) target = $region8
    $region5: #{tpu_custom_call.1} parent=1 // loop_body
      %s21 = ssub.s32 %s16, 1
      %s22 = ssub.s32 %s16, 2
      %s23 = sadd.s32 %s16, 1
      %s24 = ssub.s32 %s16, %s23
      %p25 = scmp.eq.s32.totalorder %s24, 0
      %s27 = sadd.s32 %s26, 1
      %s28 = scalar_select %p25, %s26, %s27
      %p31 = pneg %p25
      %p32 = scmp.eq.s32.totalorder %s16, 1
      %p33 = por %p31, %p32
      %p34 = scmp.ne.s32.totalorder %s26, %s29
      %p35 = scmp.eq.s32.totalorder %s16, 0
      %p36 = por %p34, %p35
      %p37 = scmp.ne.s32.totalorder %s26, %s29
      %p38 = scmp.eq.s32.totalorder %s21, 1
      %p39 = por %p37, %p38
      %p40 = scmp.ne.s32.totalorder %s29, %s30
      %p41 = scmp.eq.s32.totalorder %s21, 0
      %p42 = por %p40, %p41
      %p43 = scmp.ne.s32.totalorder %s29, %s30
      %p44 = scmp.eq.s32.totalorder %s22, 1
      %p45 = por %p43, %p44
      %p47 = scmp.ne.s32.totalorder %s30, %s46
      %p48 = scmp.eq.s32.totalorder %s22, 0
      %p49 = por %p47, %p48
      %s51 = sadd.s32 %s50, 1
      %p54 = scmp.eq.s32.totalorder %s16, 1
      %p55 = scmp.ne.s32.totalorder %s50, %s52
      %p56 = scmp.eq.s32.totalorder %s16, 0
      %p57 = por %p55, %p56
      %p58 = scmp.ne.s32.totalorder %s50, %s52
      %p59 = scmp.eq.s32.totalorder %s21, 1
      %p60 = por %p58, %p59
      %p61 = scmp.ne.s32.totalorder %s52, %s53
      %p62 = scmp.eq.s32.totalorder %s21, 0
      %p63 = por %p61, %p62
      %p64 = scmp.ne.s32.totalorder %s52, %s53
      %p65 = scmp.eq.s32.totalorder %s22, 1
      %p66 = por %p64, %p65
      %p68 = scmp.ne.s32.totalorder %s53, %s67
      %p69 = scmp.eq.s32.totalorder %s22, 0
      %p70 = por %p68, %p69
      %s72 = sadd.s32 %s71, 1
      %p75 = scmp.eq.s32.totalorder %s16, 1
      %p76 = scmp.ne.s32.totalorder %s71, %s73
      %p77 = scmp.eq.s32.totalorder %s16, 0
      %p78 = por %p76, %p77
      %p79 = scmp.ne.s32.totalorder %s71, %s73
      %p80 = scmp.eq.s32.totalorder %s21, 1
      %p81 = por %p79, %p80
      %p82 = scmp.ne.s32.totalorder %s73, %s74
      %p83 = scmp.eq.s32.totalorder %s21, 0
      %p84 = por %p82, %p83
      %p85 = scmp.ne.s32.totalorder %s73, %s74
      %p86 = scmp.eq.s32.totalorder %s22, 1
      %p87 = por %p85, %p86
      %p89 = scmp.ne.s32.totalorder %s74, %s88
      %p90 = scmp.eq.s32.totalorder %s22, 0
      %p91 = por %p89, %p90
      %s92 = ssub.s32 %s16, %s23
      %p93 = scmp.eq.s32.totalorder %s92, 0
      %s95 = sadd.s32 %s94, 1
      %s96 = scalar_select %p93, %s94, %s95
      %p99 = pneg %p93
      %p100 = scmp.eq.s32.totalorder %s16, 1
      %p101 = por %p99, %p100
      %p102 = scmp.ne.s32.totalorder %s94, %s97
      %p103 = scmp.eq.s32.totalorder %s16, 0
      %p104 = por %p102, %p103
      %p105 = scmp.ne.s32.totalorder %s94, %s97
      %p106 = scmp.eq.s32.totalorder %s21, 1
      %p107 = por %p105, %p106
      %p108 = scmp.ne.s32.totalorder %s97, %s98
      %p109 = scmp.eq.s32.totalorder %s21, 0
      %p110 = por %p108, %p109
      %p111 = scmp.ne.s32.totalorder %s97, %s98
      %p112 = scmp.eq.s32.totalorder %s22, 1
      %p113 = por %p111, %p112
      %p115 = scmp.ne.s32.totalorder %s98, %s114
      %p116 = scmp.eq.s32.totalorder %s22, 0
      %p117 = por %p115, %p116
      %p118 = scmp.le.s32.totalorder 1, %s16
      %p119 = scmp.lt.s32.totalorder %s16, 3
      %p120 = pnand %p118, %p119
      %p121 = pneg %p120
      // Predicated region
      $region9: #{tpu_custom_call.1} parent=5 // pred_check
        _
      $region10: #{tpu_custom_call.1} parent=5 // pred_check_branch
        %123 = sbr.rel (%p120) target = $region12
      $region11: #{tpu_custom_call.1} parent=5 // pred_region
        %s124 = ssub.s32 %s16, 1
        // Predicated region
        $region13: #{tpu_custom_call.1} parent=11 // pred_check
          %p125 = pneg %p63
        $region14: #{tpu_custom_call.1} parent=11 // pred_check_branch
          %127 = sbr.rel (%p125) target = $region16
        $region15: #{tpu_custom_call.1} parent=11 // pred_region
          %129 = vsyncadd [#allocation6], 0
          %s130 = sshll.u32 %s1, 4
          %s131 = int_to_ptr.hbm [resolvable:$true] %s130
          %s132 = sshll.u32 [#allocation5], 4
          %s133 = int_to_ptr.vmem [resolvable:$true] %s132
          %138 = dma.hbm_to_vmem [thread:$0]  %s131, 2048, %s133, [#allocation6], 128, 128, 8
        $region16: #{tpu_custom_call.1} parent=11 // pred_fallthru
          _
        // Predicated region
        $region17: #{tpu_custom_call.1} parent=11 // pred_check
          %p139 = pneg %p84
        $region18: #{tpu_custom_call.1} parent=11 // pred_check_branch
          %141 = sbr.rel (%p139) target = $region20
        $region19: #{tpu_custom_call.1} parent=11 // pred_region
          _
        $region20: #{tpu_custom_call.1} parent=11 // pred_fallthru
          _
      $region12: #{tpu_custom_call.1} parent=5 // pred_fallthru
        _
      %p142 = scmp.lt.s32.totalorder %s16, 2
      // Predicated region
      $region21: #{tpu_custom_call.1} parent=5 // pred_check
        %p143 = pneg %p142
      $region22: #{tpu_custom_call.1} parent=5 // pred_check_branch
        %145 = sbr.rel (%p143) target = $region24
      $region23: #{tpu_custom_call.1} parent=5 // pred_region
        // Predicated region
        $region25: #{tpu_custom_call.1} parent=23 // pred_check
          %p146 = pneg %p36
        $region26: #{tpu_custom_call.1} parent=23 // pred_check_branch
          %148 = sbr.rel (%p146) target = $region28
        $region27: #{tpu_custom_call.1} parent=23 // pred_region
          %s149 = sand.u32 %s26, 1
          %s150 = scalar_lea.sflag [#allocation3], %s149
          %s151 = sand.u32 %s26, 1
          %s152 = smul.addr %s151, 64
          %s153 = scalar_lea.vmem [#allocation2], %s152
          %155 = vsyncadd %s150, 0
          %s156 = smul.addr %s16, 16
          %s157 = smul.addr %s156, 4
          %s158 = scalar_lea.hbm %s0, %s157
          %s159 = sshll.u32 %s158, 4
          %s160 = int_to_ptr.hbm [resolvable:$true] %s159
          %s161 = sshll.u32 %s153, 4
          %s162 = int_to_ptr.vmem [resolvable:$true] %s161
          %167 = dma.hbm_to_vmem [thread:$0]  %s160, 1024, %s162, %s150, 64, 64, 4
        $region28: #{tpu_custom_call.1} parent=23 // pred_fallthru
          _
      $region24: #{tpu_custom_call.1} parent=5 // pred_fallthru
        _
      %p168 = scmp.le.s32.totalorder 1, %s16
      %p169 = scmp.lt.s32.totalorder %s16, 3
      %p170 = pnand %p168, %p169
      %p171 = pneg %p170
      // Predicated region
      $region29: #{tpu_custom_call.1} parent=5 // pred_check
        _
      $region30: #{tpu_custom_call.1} parent=5 // pred_check_branch
        %173 = sbr.rel (%p170) target = $region32
      $region31: #{tpu_custom_call.1} parent=5 // pred_region
        %s174 = ssub.s32 %s16, 1
        %s175 = sand.u32 %s29, 1
        %s176 = scalar_lea.sflag [#allocation3], %s175
        %s177 = sand.u32 %s29, 1
        %s178 = smul.addr %s177, 64
        %s179 = scalar_lea.vmem [#allocation2], %s178
        // Predicated region
        $region33: #{tpu_custom_call.1} parent=31 // pred_check
          %p180 = pneg %p42
        $region34: #{tpu_custom_call.1} parent=31 // pred_check_branch
          %182 = sbr.rel (%p180) target = $region36
        $region35: #{tpu_custom_call.1} parent=31 // pred_region
          %184 = dma.done %s176, 1024
        $region36: #{tpu_custom_call.1} parent=31 // pred_fallthru
          _
        // Predicated region
        $region37: #{tpu_custom_call.1} parent=31 // pred_check
          %p185 = pneg %p63
        $region38: #{tpu_custom_call.1} parent=31 // pred_check_branch
          %187 = sbr.rel (%p185) target = $region40
        $region39: #{tpu_custom_call.1} parent=31 // pred_region
          %189 = dma.done [#allocation6], 2048
        $region40: #{tpu_custom_call.1} parent=31 // pred_fallthru
          _
        %s190 = sand.u32 %s29, 1
        %s191 = scalar_lea.sflag [#allocation3], %s190
        %s192 = sand.u32 %s29, 1
        %s193 = smul.addr %s192, 64
        %s194 = scalar_lea.vmem [#allocation2], %s193
        %p195 = pneg %p42
        %p196 = pneg %p39
        %p197 = pneg %p63
        %p198 = pneg %p60
        %p199 = pneg %p84
        %p200 = pneg %p81
        %p201 = pneg %p110
        %p202 = pneg %p107
        %s203 = sand.u32 %s97, 1
        %s204 = scalar_lea.sflag [#allocation4], %s203
        %s205 = sand.u32 %s97, 1
        %s206 = smul.addr %s205, 336
        %s207 = scalar_lea.vmem [#allocation7], %s206
        %v209 = vld [vmem:[%s179] sm:$0xf]
        %v210 = vld [vmem:[%s179 + $0x4] sm:$0xf]
        %v211 = vld [vmem:[%s179 + $0x8] sm:$0xf]
        %v212 = vld [vmem:[%s179 + $0xc] sm:$0xf]
        %v213 = vld [vmem:[%s179 + $0x10] sm:$0xf]
        %v214 = vld [vmem:[%s179 + $0x14] sm:$0xf]
        %v215 = vld [vmem:[%s179 + $0x18] sm:$0xf]
        %v216 = vld [vmem:[%s179 + $0x1c] sm:$0xf]
        %v217 = vld [vmem:[%s179 + $0x20] sm:$0xf]
        %v218 = vld [vmem:[%s179 + $0x24] sm:$0xf]
        %v219 = vld [vmem:[%s179 + $0x28] sm:$0xf]
        %v220 = vld [vmem:[%s179 + $0x2c] sm:$0xf]
        %v221 = vld [vmem:[%s179 + $0x30] sm:$0xf]
        %v222 = vld [vmem:[%s179 + $0x34] sm:$0xf]
        %v223 = vld [vmem:[%s179 + $0x38] sm:$0xf]
        %v224 = vld [vmem:[%s179 + $0x3c] sm:$0xf]
        %v225 = vlaneseq
        %v226 = vshrl.u32 %v225, 7
        %v227 = vadd.s32 %v226, 8
        %v228 = vadd.s32 %v226, 16
        %v229 = vadd.s32 %v226, 24
        %v230 = vadd.s32 %v226, 32
        %v231 = vadd.s32 %v226, 40
        %v232 = vadd.s32 %v226, 48
        %v233 = vadd.s32 %v226, 56
        %v234 = vadd.s32 %v226, 64
        %v235 = vadd.s32 %v226, 72
        %v236 = vadd.s32 %v226, 80
        %v237 = vadd.s32 %v226, 88
        %v238 = vadd.s32 %v226, 96
        %v239 = vadd.s32 %v226, 104
        %vm240 = vcmp.lt.s32.totalorder %v226, 0
        %v241 = vsub.s32 0, %v226
        %v242 = vsel %vm240, %v241, %v226
        %v243 = vshrl.u32 %v242, 4
        %v244 = vand.u32 %v242, 15
        %v245 = vsub.s32 0, %v244
        %v246 = vsel %vm240, %v245, %v244
        %vm247 = vcmp.lt.s32.totalorder %v227, 0
        %v248 = vsub.s32 0, %v227
        %v249 = vsel %vm247, %v248, %v227
        %v250 = vshrl.u32 %v249, 4
        %v251 = vand.u32 %v249, 15
        %v252 = vsub.s32 0, %v251
        %v253 = vsel %vm247, %v252, %v251
        %vm254 = vcmp.lt.s32.totalorder %v228, 0
        %v255 = vsub.s32 0, %v228
        %v256 = vsel %vm254, %v255, %v228
        %v257 = vshrl.u32 %v256, 4
        %v258 = vand.u32 %v256, 15
        %v259 = vsub.s32 0, %v258
        %v260 = vsel %vm254, %v259, %v258
        %vm261 = vcmp.lt.s32.totalorder %v229, 0
        %v262 = vsub.s32 0, %v229
        %v263 = vsel %vm261, %v262, %v229
        %v264 = vshrl.u32 %v263, 4
        %v265 = vand.u32 %v263, 15
        %v266 = vsub.s32 0, %v265
        %v267 = vsel %vm261, %v266, %v265
        %vm268 = vcmp.lt.s32.totalorder %v230, 0
        %v269 = vsub.s32 0, %v230
        %v270 = vsel %vm268, %v269, %v230
        %v271 = vshrl.u32 %v270, 4
        %v272 = vand.u32 %v270, 15
        %v273 = vsub.s32 0, %v272
        %v274 = vsel %vm268, %v273, %v272
        %vm275 = vcmp.lt.s32.totalorder %v231, 0
        %v276 = vsub.s32 0, %v231
        %v277 = vsel %vm275, %v276, %v231
        %v278 = vshrl.u32 %v277, 4
        %v279 = vand.u32 %v277, 15
        %v280 = vsub.s32 0, %v279
        %v281 = vsel %vm275, %v280, %v279
        %vm282 = vcmp.lt.s32.totalorder %v232, 0
        %v283 = vsub.s32 0, %v232
        %v284 = vsel %vm282, %v283, %v232
        %v285 = vshrl.u32 %v284, 4
        %v286 = vand.u32 %v284, 15
        %v287 = vsub.s32 0, %v286
        %v288 = vsel %vm282, %v287, %v286
        %vm289 = vcmp.lt.s32.totalorder %v233, 0
        %v290 = vsub.s32 0, %v233
        %v291 = vsel %vm289, %v290, %v233
        %v292 = vshrl.u32 %v291, 4
        %v293 = vand.u32 %v291, 15
        %v294 = vsub.s32 0, %v293
        %v295 = vsel %vm289, %v294, %v293
        %vm296 = vcmp.lt.s32.totalorder %v234, 0
        %v297 = vsub.s32 0, %v234
        %v298 = vsel %vm296, %v297, %v234
        %v299 = vshrl.u32 %v298, 4
        %v300 = vand.u32 %v298, 15
        %v301 = vsub.s32 0, %v300
        %v302 = vsel %vm296, %v301, %v300
        %vm303 = vcmp.lt.s32.totalorder %v235, 0
        %v304 = vsub.s32 0, %v235
        %v305 = vsel %vm303, %v304, %v235
        %v306 = vshrl.u32 %v305, 4
        %v307 = vand.u32 %v305, 15
        %v308 = vsub.s32 0, %v307
        %v309 = vsel %vm303, %v308, %v307
        %vm310 = vcmp.lt.s32.totalorder %v236, 0
        %v311 = vsub.s32 0, %v236
        %v312 = vsel %vm310, %v311, %v236
        %v313 = vshrl.u32 %v312, 4
        %v314 = vand.u32 %v312, 15
        %v315 = vsub.s32 0, %v314
        %v316 = vsel %vm310, %v315, %v314
        %vm317 = vcmp.lt.s32.totalorder %v237, 0
        %v318 = vsub.s32 0, %v237
        %v319 = vsel %vm317, %v318, %v237
        %v320 = vshrl.u32 %v319, 4
        %v321 = vand.u32 %v319, 15
        %v322 = vsub.s32 0, %v321
        %v323 = vsel %vm317, %v322, %v321
        %vm324 = vcmp.lt.s32.totalorder %v238, 0
        %v325 = vsub.s32 0, %v238
        %v326 = vsel %vm324, %v325, %v238
        %v327 = vshrl.u32 %v326, 4
        %v328 = vand.u32 %v326, 15
        %v329 = vsub.s32 0, %v328
        %v330 = vsel %vm324, %v329, %v328
        %vm331 = vcmp.lt.s32.totalorder %v239, 0
        %v332 = vsub.s32 0, %v239
        %v333 = vsel %vm331, %v332, %v239
        %v334 = vshrl.u32 %v333, 4
        %v335 = vand.u32 %v333, 15
        %v336 = vsub.s32 0, %v335
        %v337 = vsel %vm331, %v336, %v335
        %vm338 = vcmp.ne.s32.totalorder %v246, 0
        %vm339 = vcmp.ne.s32.totalorder %v253, 0
        %vm340 = vcmp.ne.s32.totalorder %v260, 0
        %vm341 = vcmp.ne.s32.totalorder %v267, 0
        %vm342 = vcmp.ne.s32.totalorder %v274, 0
        %vm343 = vcmp.ne.s32.totalorder %v281, 0
        %vm344 = vcmp.ne.s32.totalorder %v288, 0
        %vm345 = vcmp.ne.s32.totalorder %v295, 0
        %vm346 = vcmp.ne.s32.totalorder %v302, 0
        %vm347 = vcmp.ne.s32.totalorder %v309, 0
        %vm348 = vcmp.ne.s32.totalorder %v316, 0
        %vm349 = vcmp.ne.s32.totalorder %v323, 0
        %vm350 = vcmp.ne.s32.totalorder %v330, 0
        %vm351 = vcmp.ne.s32.totalorder %v337, 0
        %vm352 = vcmp.lt.s32.totalorder %v246, 0
        %vm353 = vcmp.lt.s32.totalorder %v253, 0
        %vm354 = vcmp.lt.s32.totalorder %v260, 0
        %vm355 = vcmp.lt.s32.totalorder %v267, 0
        %vm356 = vcmp.lt.s32.totalorder %v274, 0
        %vm357 = vcmp.lt.s32.totalorder %v281, 0
        %vm358 = vcmp.lt.s32.totalorder %v288, 0
        %vm359 = vcmp.lt.s32.totalorder %v295, 0
        %vm360 = vcmp.lt.s32.totalorder %v302, 0
        %vm361 = vcmp.lt.s32.totalorder %v309, 0
        %vm362 = vcmp.lt.s32.totalorder %v316, 0
        %vm363 = vcmp.lt.s32.totalorder %v323, 0
        %vm364 = vcmp.lt.s32.totalorder %v330, 0
        %vm365 = vcmp.lt.s32.totalorder %v337, 0
        %vm366 = vmand %vm352, %vm338
        %vm367 = vmand %vm353, %vm339
        %vm368 = vmand %vm354, %vm340
        %vm369 = vmand %vm355, %vm341
        %vm370 = vmand %vm356, %vm342
        %vm371 = vmand %vm357, %vm343
        %vm372 = vmand %vm358, %vm344
        %vm373 = vmand %vm359, %vm345
        %vm374 = vmand %vm360, %vm346
        %vm375 = vmand %vm361, %vm347
        %vm376 = vmand %vm362, %vm348
        %vm377 = vmand %vm363, %vm349
        %vm378 = vmand %vm364, %vm350
        %vm379 = vmand %vm365, %vm351
        %v380 = vadd.s32 %v246, 16
        %v381 = vadd.s32 %v253, 16
        %v382 = vadd.s32 %v260, 16
        %v383 = vadd.s32 %v267, 16
        %v384 = vadd.s32 %v274, 16
        %v385 = vadd.s32 %v281, 16
        %v386 = vadd.s32 %v288, 16
        %v387 = vadd.s32 %v295, 16
        %v388 = vadd.s32 %v302, 16
        %v389 = vadd.s32 %v309, 16
        %v390 = vadd.s32 %v316, 16
        %v391 = vadd.s32 %v323, 16
        %v392 = vadd.s32 %v330, 16
        %v393 = vadd.s32 %v337, 16
        %v394 = vsel %vm366, %v380, %v246
        %v395 = vsel %vm367, %v381, %v253
        %v396 = vsel %vm368, %v382, %v260
        %v397 = vsel %vm369, %v383, %v267
        %v398 = vsel %vm370, %v384, %v274
        %v399 = vsel %vm371, %v385, %v281
        %v400 = vsel %vm372, %v386, %v288
        %v401 = vsel %vm373, %v387, %v295
        %v402 = vsel %vm374, %v388, %v302
        %v403 = vsel %vm375, %v389, %v309
        %v404 = vsel %vm376, %v390, %v316
        %v405 = vsel %vm377, %v391, %v323
        %v406 = vsel %vm378, %v392, %v330
        %v407 = vsel %vm379, %v393, %v337
        %v408 = vld [vmem:[#allocation5] sm:$0xff]
        %v409 = vld [vmem:[#allocation5 + $0x8] sm:$0xff]
        %v410 = vld [vmem:[#allocation5 + $0x10] sm:$0xff]
        %v411 = vld [vmem:[#allocation5 + $0x18] sm:$0xff]
        %v412 = vld [vmem:[#allocation5 + $0x20] sm:$0xff]
        %v413 = vld [vmem:[#allocation5 + $0x28] sm:$0xff]
        %v414 = vld [vmem:[#allocation5 + $0x30] sm:$0xff]
        %v415 = vld [vmem:[#allocation5 + $0x38] sm:$0xff]
        %v430 = vunpack.c.l.b16 %v209
        %v431 = vunpack.c.l.b16 %v210
        %v432 = vunpack.c.l.b16 %v211
        %v433 = vunpack.c.l.b16 %v212
        %v434 = vunpack.c.l.b16 %v213
        %v435 = vunpack.c.l.b16 %v214
        %v436 = vunpack.c.l.b16 %v215
        %v437 = vunpack.c.l.b16 %v216
        %v438 = vunpack.c.l.b16 %v217
        %v439 = vunpack.c.l.b16 %v218
        %v440 = vunpack.c.l.b16 %v219
        %v441 = vunpack.c.l.b16 %v220
        %v442 = vunpack.c.l.b16 %v221
        %v443 = vunpack.c.l.b16 %v222
        %v444 = vpack.c.b16 %v431, %v430
        %v445 = vpack.c.b16 %v433, %v432
        %v446 = vpack.c.b16 %v435, %v434
        %v447 = vpack.c.b16 %v437, %v436
        %v448 = vpack.c.b16 %v439, %v438
        %v449 = vpack.c.b16 %v441, %v440
        %v450 = vpack.c.b16 %v443, %v442
        %v459 = vunpack.c.l.b16 %v408
        %v460 = vunpack.c.h.b16 %v408
        %v461 = vunpack.c.l.b16 %v409
        %v462 = vunpack.c.h.b16 %v409
        %v463 = vunpack.c.l.b16 %v410
        %v464 = vunpack.c.h.b16 %v410
        %v465 = vunpack.c.l.b16 %v411
        %v466 = vunpack.c.h.b16 %v411
        %v467 = vunpack.c.l.b16 %v412
        %v468 = vunpack.c.h.b16 %v412
        %v469 = vunpack.c.l.b16 %v413
        %v470 = vunpack.c.h.b16 %v413
        %v471 = vunpack.c.l.b16 %v414
        %v472 = vunpack.c.h.b16 %v414
        %v473 = vunpack.c.l.b16 %v415
        %v474 = vunpack.c.h.b16 %v415
        %v475 = vpack.c.b16 %v461, %v459
        %v476 = vpack.c.b16 %v462, %v460
        %v477 = vpack.c.b16 %v465, %v463
        %v478 = vpack.c.b16 %v466, %v464
        %v479 = vpack.c.b16 %v469, %v467
        %v480 = vpack.c.b16 %v470, %v468
        %v481 = vpack.c.b16 %v473, %v471
        %v482 = vpack.c.b16 %v474, %v472
        %vm491 = vcmask 523264
        %v493 = vsel %vm491, %v444, 0
        %v496 = vsel %vm491, %v445, 0
        %v499 = vsel %vm491, %v446, 0
        %v502 = vsel %vm491, %v447, 0
        %v505 = vsel %vm491, %v448, 0
        %v508 = vsel %vm491, %v449, 0
        %v511 = vsel %vm491, %v450, 0
        %513 = vmatpush.bf16.msra.mxu0 0
        %514 = vmatpush.bf16.msra.mxu0 0
        %515 = vmatpush.bf16.msra.mxu0 0
        %516 = vmatpush.bf16.msra.mxu0 0
        %517 = vmatpush.bf16.msra.mxu0 %v481
        %518 = vmatpush.bf16.msra.mxu0 %v479
        %519 = vmatpush.bf16.msra.mxu0 %v477
        %520 = vmatpush.bf16.msra.mxu0 %v475
        %521 = vmatmul.bf16.gmra.mxu0 %v493
        %v522 = vpop.f32.mrf.mxu0
        %v523 = vadd.f32 0.0, %v522
        %v524 = vpop.f32.mrf.mxu0
        %v525 = vadd.f32 0.0, %v524
        %526 = vmatmul.bf16.gmra.mxu0 %v496
        %v527 = vpop.f32.mrf.mxu0
        %v528 = vadd.f32 0.0, %v527
        %v529 = vpop.f32.mrf.mxu0
        %v530 = vadd.f32 0.0, %v529
        %531 = vmatmul.bf16.gmra.mxu0 %v499
        %v532 = vpop.f32.mrf.mxu0
        %v533 = vadd.f32 0.0, %v532
        %v534 = vpop.f32.mrf.mxu0
        %v535 = vadd.f32 0.0, %v534
        %536 = vmatmul.bf16.gmra.mxu0 %v502
        %v537 = vpop.f32.mrf.mxu0
        %v538 = vadd.f32 0.0, %v537
        %v539 = vpop.f32.mrf.mxu0
        %v540 = vadd.f32 0.0, %v539
        %541 = vmatmul.bf16.gmra.mxu0 %v505
        %v542 = vpop.f32.mrf.mxu0
        %v543 = vadd.f32 0.0, %v542
        %v544 = vpop.f32.mrf.mxu0
        %v545 = vadd.f32 0.0, %v544
        %546 = vmatmul.bf16.gmra.mxu0 %v508
        %v547 = vpop.f32.mrf.mxu0
        %v548 = vadd.f32 0.0, %v547
        %v549 = vpop.f32.mrf.mxu0
        %v550 = vadd.f32 0.0, %v549
        %551 = vmatmul.bf16.gmra.mxu0 %v511
        %v552 = vpop.f32.mrf.mxu0
        %v553 = vadd.f32 0.0, %v552
        %v554 = vpop.f32.mrf.mxu0
        %v555 = vadd.f32 0.0, %v554
        %556 = vdwg.mxu0
        %557 = vmatpush.bf16.msra.mxu0 0
        %558 = vmatpush.bf16.msra.mxu0 0
        %559 = vmatpush.bf16.msra.mxu0 0
        %560 = vmatpush.bf16.msra.mxu0 0
        %561 = vmatpush.bf16.msra.mxu0 %v482
        %562 = vmatpush.bf16.msra.mxu0 %v480
        %563 = vmatpush.bf16.msra.mxu0 %v478
        %564 = vmatpush.bf16.msra.mxu0 %v476
        %565 = vmatmul.bf16.gmra.mxu0 %v493
        %v566 = vpop.f32.mrf.mxu0
        %v567 = vadd.f32 0.0, %v566
        %v568 = vpop.f32.mrf.mxu0
        %v569 = vadd.f32 0.0, %v568
        %570 = vmatmul.bf16.gmra.mxu0 %v496
        %v571 = vpop.f32.mrf.mxu0
        %v572 = vadd.f32 0.0, %v571
        %v573 = vpop.f32.mrf.mxu0
        %v574 = vadd.f32 0.0, %v573
        %575 = vmatmul.bf16.gmra.mxu0 %v499
        %v576 = vpop.f32.mrf.mxu0
        %v577 = vadd.f32 0.0, %v576
        %v578 = vpop.f32.mrf.mxu0
        %v579 = vadd.f32 0.0, %v578
        %580 = vmatmul.bf16.gmra.mxu0 %v502
        %v581 = vpop.f32.mrf.mxu0
        %v582 = vadd.f32 0.0, %v581
        %v583 = vpop.f32.mrf.mxu0
        %v584 = vadd.f32 0.0, %v583
        %585 = vmatmul.bf16.gmra.mxu0 %v505
        %v586 = vpop.f32.mrf.mxu0
        %v587 = vadd.f32 0.0, %v586
        %v588 = vpop.f32.mrf.mxu0
        %v589 = vadd.f32 0.0, %v588
        %590 = vmatmul.bf16.gmra.mxu0 %v508
        %v591 = vpop.f32.mrf.mxu0
        %v592 = vadd.f32 0.0, %v591
        %v593 = vpop.f32.mrf.mxu0
        %v594 = vadd.f32 0.0, %v593
        %595 = vmatmul.bf16.gmra.mxu0 %v511
        %v596 = vpop.f32.mrf.mxu0
        %v597 = vadd.f32 0.0, %v596
        %v598 = vpop.f32.mrf.mxu0
        %v599 = vadd.f32 0.0, %v598
        %600 = vdwg.mxu0
        %vm615 = vcmask 1040384
        %v616 = vrot.slane %v523, 7
        %v617 = vrot.slane %v525, 7
        %v618 = vsel %vm615, %v616, %v617
        %v619 = vrot.slane %v528, 7
        %v620 = vsel %vm615, %v617, %v619
        %v621 = vrot.slane %v530, 7
        %v622 = vsel %vm615, %v619, %v621
        %v623 = vrot.slane %v533, 7
        %v624 = vsel %vm615, %v621, %v623
        %v625 = vrot.slane %v535, 7
        %v626 = vsel %vm615, %v623, %v625
        %v627 = vrot.slane %v538, 7
        %v628 = vsel %vm615, %v625, %v627
        %v629 = vrot.slane %v540, 7
        %v630 = vsel %vm615, %v627, %v629
        %v631 = vrot.slane %v543, 7
        %v632 = vsel %vm615, %v629, %v631
        %v633 = vrot.slane %v545, 7
        %v634 = vsel %vm615, %v631, %v633
        %v635 = vrot.slane %v548, 7
        %v636 = vsel %vm615, %v633, %v635
        %v637 = vrot.slane %v550, 7
        %v638 = vsel %vm615, %v635, %v637
        %v639 = vrot.slane %v553, 7
        %v640 = vsel %vm615, %v637, %v639
        %v641 = vrot.slane %v555, 7
        %v642 = vsel %vm615, %v639, %v641
        %v657 = vsel %vm615, 0.0, %v616
        %vm658 = vcmp.ge.s32.totalorder %v394, 1
        %vm659 = vcmp.ge.s32.totalorder %v395, 1
        %vm660 = vcmp.ge.s32.totalorder %v396, 1
        %vm661 = vcmp.ge.s32.totalorder %v397, 1
        %vm662 = vcmp.ge.s32.totalorder %v398, 1
        %vm663 = vcmp.ge.s32.totalorder %v399, 1
        %vm664 = vcmp.ge.s32.totalorder %v400, 1
        %vm665 = vcmp.ge.s32.totalorder %v401, 1
        %vm666 = vcmp.ge.s32.totalorder %v402, 1
        %vm667 = vcmp.ge.s32.totalorder %v403, 1
        %vm668 = vcmp.ge.s32.totalorder %v404, 1
        %vm669 = vcmp.ge.s32.totalorder %v405, 1
        %vm670 = vcmp.ge.s32.totalorder %v406, 1
        %vm671 = vcmp.ge.s32.totalorder %v407, 1
        %v672 = vsel %vm658, 1, 0
        %v673 = vsel %vm659, 1, 0
        %v674 = vsel %vm660, 1, 0
        %v675 = vsel %vm661, 1, 0
        %v676 = vsel %vm662, 1, 0
        %v677 = vsel %vm663, 1, 0
        %v678 = vsel %vm664, 1, 0
        %v679 = vsel %vm665, 1, 0
        %v680 = vsel %vm666, 1, 0
        %v681 = vsel %vm667, 1, 0
        %v682 = vsel %vm668, 1, 0
        %v683 = vsel %vm669, 1, 0
        %v684 = vsel %vm670, 1, 0
        %v685 = vsel %vm671, 1, 0
        %vm686 = vcmp.eq.s32.totalorder %v672, 1
        %vm687 = vcmp.eq.s32.totalorder %v673, 1
        %vm688 = vcmp.eq.s32.totalorder %v674, 1
        %vm689 = vcmp.eq.s32.totalorder %v675, 1
        %vm690 = vcmp.eq.s32.totalorder %v676, 1
        %vm691 = vcmp.eq.s32.totalorder %v677, 1
        %vm692 = vcmp.eq.s32.totalorder %v678, 1
        %vm693 = vcmp.eq.s32.totalorder %v679, 1
        %vm694 = vcmp.eq.s32.totalorder %v680, 1
        %vm695 = vcmp.eq.s32.totalorder %v681, 1
        %vm696 = vcmp.eq.s32.totalorder %v682, 1
        %vm697 = vcmp.eq.s32.totalorder %v683, 1
        %vm698 = vcmp.eq.s32.totalorder %v684, 1
        %vm699 = vcmp.eq.s32.totalorder %v685, 1
        %v700 = vsel %vm686, %v657, 0.0
        %v701 = vsel %vm687, %v618, 0.0
        %v702 = vsel %vm688, %v620, 0.0
        %v703 = vsel %vm689, %v622, 0.0
        %v704 = vsel %vm690, %v624, 0.0
        %v705 = vsel %vm691, %v626, 0.0
        %v706 = vsel %vm692, %v628, 0.0
        %v707 = vsel %vm693, %v630, 0.0
        %v708 = vsel %vm694, %v632, 0.0
        %v709 = vsel %vm695, %v634, 0.0
        %v710 = vsel %vm696, %v636, 0.0
        %v711 = vsel %vm697, %v638, 0.0
        %v712 = vsel %vm698, %v640, 0.0
        %v713 = vsel %vm699, %v642, 0.0
        %v714 = vadd.f32 %v700, %v567
        %v715 = vadd.f32 %v701, %v569
        %v716 = vadd.f32 %v702, %v572
        %v717 = vadd.f32 %v703, %v574
        %v718 = vadd.f32 %v704, %v577
        %v719 = vadd.f32 %v705, %v579
        %v720 = vadd.f32 %v706, %v582
        %v721 = vadd.f32 %v707, %v584
        %v722 = vadd.f32 %v708, %v587
        %v723 = vadd.f32 %v709, %v589
        %v724 = vadd.f32 %v710, %v592
        %v725 = vadd.f32 %v711, %v594
        %v726 = vadd.f32 %v712, %v597
        %v727 = vadd.f32 %v713, %v599
        %s728 = scalar_lea.vmem [#allocation5], 64
        %v729 = vld [vmem:[%s728] sm:$0xff]
        %v730 = vld [vmem:[%s728 + $0x8] sm:$0xff]
        %v731 = vld [vmem:[%s728 + $0x10] sm:$0xff]
        %v732 = vld [vmem:[%s728 + $0x18] sm:$0xff]
        %v733 = vld [vmem:[%s728 + $0x20] sm:$0xff]
        %v734 = vld [vmem:[%s728 + $0x28] sm:$0xff]
        %v735 = vld [vmem:[%s728 + $0x30] sm:$0xff]
        %v736 = vld [vmem:[%s728 + $0x38] sm:$0xff]
        %v739 = vunpack.c.l.b16 %v223
        %v740 = vunpack.c.l.b16 %v224
        %v741 = vpack.c.b16 %v740, %v739
        %v750 = vunpack.c.l.b16 %v729
        %v751 = vunpack.c.h.b16 %v729
        %v752 = vunpack.c.l.b16 %v730
        %v753 = vunpack.c.h.b16 %v730
        %v754 = vunpack.c.l.b16 %v731
        %v755 = vunpack.c.h.b16 %v731
        %v756 = vunpack.c.l.b16 %v732
        %v757 = vunpack.c.h.b16 %v732
        %v758 = vunpack.c.l.b16 %v733
        %v759 = vunpack.c.h.b16 %v733
        %v760 = vunpack.c.l.b16 %v734
        %v761 = vunpack.c.h.b16 %v734
        %v762 = vunpack.c.l.b16 %v735
        %v763 = vunpack.c.h.b16 %v735
        %v764 = vunpack.c.l.b16 %v736
        %v765 = vunpack.c.h.b16 %v736
        %v766 = vpack.c.b16 %v752, %v750
        %v767 = vpack.c.b16 %v753, %v751
        %v768 = vpack.c.b16 %v756, %v754
        %v769 = vpack.c.b16 %v757, %v755
        %v770 = vpack.c.b16 %v760, %v758
        %v771 = vpack.c.b16 %v761, %v759
        %v772 = vpack.c.b16 %v764, %v762
        %v773 = vpack.c.b16 %v765, %v763
        %v783 = vsel %vm491, %v741, 0
        %785 = vmatpush.bf16.msra.mxu0 0
        %786 = vmatpush.bf16.msra.mxu0 0
        %787 = vmatpush.bf16.msra.mxu0 0
        %788 = vmatpush.bf16.msra.mxu0 0
        %789 = vmatpush.bf16.msra.mxu0 %v772
        %790 = vmatpush.bf16.msra.mxu0 %v770
        %791 = vmatpush.bf16.msra.mxu0 %v768
        %792 = vmatpush.bf16.msra.mxu0 %v766
        %793 = vmatmul.bf16.gmra.mxu0 %v496
        %v794 = vpop.f32.mrf.mxu0
        %v795 = vadd.f32 0.0, %v794
        %v796 = vpop.f32.mrf.mxu0
        %v797 = vadd.f32 0.0, %v796
        %798 = vmatmul.bf16.gmra.mxu0 %v499
        %v799 = vpop.f32.mrf.mxu0
        %v800 = vadd.f32 0.0, %v799
        %v801 = vpop.f32.mrf.mxu0
        %v802 = vadd.f32 0.0, %v801
        %803 = vmatmul.bf16.gmra.mxu0 %v502
        %v804 = vpop.f32.mrf.mxu0
        %v805 = vadd.f32 0.0, %v804
        %v806 = vpop.f32.mrf.mxu0
        %v807 = vadd.f32 0.0, %v806
        %808 = vmatmul.bf16.gmra.mxu0 %v505
        %v809 = vpop.f32.mrf.mxu0
        %v810 = vadd.f32 0.0, %v809
        %v811 = vpop.f32.mrf.mxu0
        %v812 = vadd.f32 0.0, %v811
        %813 = vmatmul.bf16.gmra.mxu0 %v508
        %v814 = vpop.f32.mrf.mxu0
        %v815 = vadd.f32 0.0, %v814
        %v816 = vpop.f32.mrf.mxu0
        %v817 = vadd.f32 0.0, %v816
        %818 = vmatmul.bf16.gmra.mxu0 %v511
        %v819 = vpop.f32.mrf.mxu0
        %v820 = vadd.f32 0.0, %v819
        %v821 = vpop.f32.mrf.mxu0
        %v822 = vadd.f32 0.0, %v821
        %823 = vmatmul.bf16.gmra.mxu0 %v783
        %v824 = vpop.f32.mrf.mxu0
        %v825 = vadd.f32 0.0, %v824
        %v826 = vpop.f32.mrf.mxu0
        %v827 = vadd.f32 0.0, %v826
        %828 = vdwg.mxu0
        %829 = vmatpush.bf16.msra.mxu0 0
        %830 = vmatpush.bf16.msra.mxu0 0
        %831 = vmatpush.bf16.msra.mxu0 0
        %832 = vmatpush.bf16.msra.mxu0 0
        %833 = vmatpush.bf16.msra.mxu0 %v773
        %834 = vmatpush.bf16.msra.mxu0 %v771
        %835 = vmatpush.bf16.msra.mxu0 %v769
        %836 = vmatpush.bf16.msra.mxu0 %v767
        %837 = vmatmul.bf16.gmra.mxu0 %v496
        %v838 = vpop.f32.mrf.mxu0
        %v839 = vadd.f32 0.0, %v838
        %v840 = vpop.f32.mrf.mxu0
        %v841 = vadd.f32 0.0, %v840
        %842 = vmatmul.bf16.gmra.mxu0 %v499
        %v843 = vpop.f32.mrf.mxu0
        %v844 = vadd.f32 0.0, %v843
        %v845 = vpop.f32.mrf.mxu0
        %v846 = vadd.f32 0.0, %v845
        %847 = vmatmul.bf16.gmra.mxu0 %v502
        %v848 = vpop.f32.mrf.mxu0
        %v849 = vadd.f32 0.0, %v848
        %v850 = vpop.f32.mrf.mxu0
        %v851 = vadd.f32 0.0, %v850
        %852 = vmatmul.bf16.gmra.mxu0 %v505
        %v853 = vpop.f32.mrf.mxu0
        %v854 = vadd.f32 0.0, %v853
        %v855 = vpop.f32.mrf.mxu0
        %v856 = vadd.f32 0.0, %v855
        %857 = vmatmul.bf16.gmra.mxu0 %v508
        %v858 = vpop.f32.mrf.mxu0
        %v859 = vadd.f32 0.0, %v858
        %v860 = vpop.f32.mrf.mxu0
        %v861 = vadd.f32 0.0, %v860
        %862 = vmatmul.bf16.gmra.mxu0 %v511
        %v863 = vpop.f32.mrf.mxu0
        %v864 = vadd.f32 0.0, %v863
        %v865 = vpop.f32.mrf.mxu0
        %v866 = vadd.f32 0.0, %v865
        %867 = vmatmul.bf16.gmra.mxu0 %v783
        %v868 = vpop.f32.mrf.mxu0
        %v869 = vadd.f32 0.0, %v868
        %v870 = vpop.f32.mrf.mxu0
        %v871 = vadd.f32 0.0, %v870
        %872 = vdwg.mxu0
        %v887 = vrot.slane %v795, 7
        %v888 = vrot.slane %v797, 7
        %v889 = vsel %vm615, %v887, %v888
        %v890 = vrot.slane %v800, 7
        %v891 = vsel %vm615, %v888, %v890
        %v892 = vrot.slane %v802, 7
        %v893 = vsel %vm615, %v890, %v892
        %v894 = vrot.slane %v805, 7
        %v895 = vsel %vm615, %v892, %v894
        %v896 = vrot.slane %v807, 7
        %v897 = vsel %vm615, %v894, %v896
        %v898 = vrot.slane %v810, 7
        %v899 = vsel %vm615, %v896, %v898
        %v900 = vrot.slane %v812, 7
        %v901 = vsel %vm615, %v898, %v900
        %v902 = vrot.slane %v815, 7
        %v903 = vsel %vm615, %v900, %v902
        %v904 = vrot.slane %v817, 7
        %v905 = vsel %vm615, %v902, %v904
        %v906 = vrot.slane %v820, 7
        %v907 = vsel %vm615, %v904, %v906
        %v908 = vrot.slane %v822, 7
        %v909 = vsel %vm615, %v906, %v908
        %v910 = vrot.slane %v825, 7
        %v911 = vsel %vm615, %v908, %v910
        %v912 = vrot.slane %v827, 7
        %v913 = vsel %vm615, %v910, %v912
        %v928 = vsel %vm615, 0.0, %v887
        %v929 = vsel %vm686, %v928, 0.0
        %v930 = vsel %vm687, %v889, 0.0
        %v931 = vsel %vm688, %v891, 0.0
        %v932 = vsel %vm689, %v893, 0.0
        %v933 = vsel %vm690, %v895, 0.0
        %v934 = vsel %vm691, %v897, 0.0
        %v935 = vsel %vm692, %v899, 0.0
        %v936 = vsel %vm693, %v901, 0.0
        %v937 = vsel %vm694, %v903, 0.0
        %v938 = vsel %vm695, %v905, 0.0
        %v939 = vsel %vm696, %v907, 0.0
        %v940 = vsel %vm697, %v909, 0.0
        %v941 = vsel %vm698, %v911, 0.0
        %v942 = vsel %vm699, %v913, 0.0
        %v943 = vadd.f32 %v714, %v929
        %v944 = vadd.f32 %v715, %v930
        %v945 = vadd.f32 %v716, %v931
        %v946 = vadd.f32 %v717, %v932
        %v947 = vadd.f32 %v718, %v933
        %v948 = vadd.f32 %v719, %v934
        %v949 = vadd.f32 %v720, %v935
        %v950 = vadd.f32 %v721, %v936
        %v951 = vadd.f32 %v722, %v937
        %v952 = vadd.f32 %v723, %v938
        %v953 = vadd.f32 %v724, %v939
        %v954 = vadd.f32 %v725, %v940
        %v955 = vadd.f32 %v726, %v941
        %v956 = vadd.f32 %v727, %v942
        %v957 = vadd.f32 %v943, %v839
        %v958 = vadd.f32 %v944, %v841
        %v959 = vadd.f32 %v945, %v844
        %v960 = vadd.f32 %v946, %v846
        %v961 = vadd.f32 %v947, %v849
        %v962 = vadd.f32 %v948, %v851
        %v963 = vadd.f32 %v949, %v854
        %v964 = vadd.f32 %v950, %v856
        %v965 = vadd.f32 %v951, %v859
        %v966 = vadd.f32 %v952, %v861
        %v967 = vadd.f32 %v953, %v864
        %v968 = vadd.f32 %v954, %v866
        %v969 = vadd.f32 %v955, %v869
        %v970 = vadd.f32 %v956, %v871
        %v971 = vld [vmem:[%s2] sm:$0x1]
        %v973 = vperm.slane %v971, 0
        %v975 = vadd.f32 %v957, %v973
        %v976 = vadd.f32 %v958, %v973
        %v977 = vadd.f32 %v959, %v973
        %v978 = vadd.f32 %v960, %v973
        %v979 = vadd.f32 %v961, %v973
        %v980 = vadd.f32 %v962, %v973
        %v981 = vadd.f32 %v963, %v973
        %v982 = vadd.f32 %v964, %v973
        %v983 = vadd.f32 %v965, %v973
        %v984 = vadd.f32 %v966, %v973
        %v985 = vadd.f32 %v967, %v973
        %v986 = vadd.f32 %v968, %v973
        %v987 = vadd.f32 %v969, %v973
        %v988 = vadd.f32 %v970, %v973
        %989 = vst [vmem:[%s207] sm:$0xff] %v975
        %990 = vst [vmem:[%s207 + $0x8] sm:$0xff] %v976
        %991 = vst [vmem:[%s207 + $0x10] sm:$0xff] %v977
        %992 = vst [vmem:[%s207 + $0x18] sm:$0xff] %v978
        %993 = vst [vmem:[%s207 + $0x20] sm:$0xff] %v979
        %994 = vst [vmem:[%s207 + $0x28] sm:$0xff] %v980
        %995 = vst [vmem:[%s207 + $0x30] sm:$0xff] %v981
        %996 = vst [vmem:[%s207 + $0x38] sm:$0xff] %v982
        %997 = vst [vmem:[%s207 + $0x40] sm:$0xff] %v983
        %998 = vst [vmem:[%s207 + $0x48] sm:$0xff] %v984
        %999 = vst [vmem:[%s207 + $0x50] sm:$0xff] %v985
        %1000 = vst [vmem:[%s207 + $0x58] sm:$0xff] %v986
        %1001 = vst [vmem:[%s207 + $0x60] sm:$0xff] %v987
        %1002 = vst [vmem:[%s207 + $0x68] sm:$0xff] %v988
        %s1003 = scalar_lea.vmem %s207, 112 [#allocation7]
        %1004 = vst [vmem:[%s1003] sm:$0xff] %v975
        %1005 = vst [vmem:[%s1003 + $0x8] sm:$0xff] %v976
        %1006 = vst [vmem:[%s1003 + $0x10] sm:$0xff] %v977
        %1007 = vst [vmem:[%s1003 + $0x18] sm:$0xff] %v978
        %1008 = vst [vmem:[%s1003 + $0x20] sm:$0xff] %v979
        %1009 = vst [vmem:[%s1003 + $0x28] sm:$0xff] %v980
        %1010 = vst [vmem:[%s1003 + $0x30] sm:$0xff] %v981
        %1011 = vst [vmem:[%s1003 + $0x38] sm:$0xff] %v982
        %1012 = vst [vmem:[%s1003 + $0x40] sm:$0xff] %v983
        %1013 = vst [vmem:[%s1003 + $0x48] sm:$0xff] %v984
        %1014 = vst [vmem:[%s1003 + $0x50] sm:$0xff] %v985
        %1015 = vst [vmem:[%s1003 + $0x58] sm:$0xff] %v986
        %1016 = vst [vmem:[%s1003 + $0x60] sm:$0xff] %v987
        %1017 = vst [vmem:[%s1003 + $0x68] sm:$0xff] %v988
        %s1018 = scalar_lea.vmem %s207, 224 [#allocation7]
        %1019 = vst [vmem:[%s1018] sm:$0xff] %v975
        %1020 = vst [vmem:[%s1018 + $0x8] sm:$0xff] %v976
        %1021 = vst [vmem:[%s1018 + $0x10] sm:$0xff] %v977
        %1022 = vst [vmem:[%s1018 + $0x18] sm:$0xff] %v978
        %1023 = vst [vmem:[%s1018 + $0x20] sm:$0xff] %v979
        %1024 = vst [vmem:[%s1018 + $0x28] sm:$0xff] %v980
        %1025 = vst [vmem:[%s1018 + $0x30] sm:$0xff] %v981
        %1026 = vst [vmem:[%s1018 + $0x38] sm:$0xff] %v982
        %1027 = vst [vmem:[%s1018 + $0x40] sm:$0xff] %v983
        %1028 = vst [vmem:[%s1018 + $0x48] sm:$0xff] %v984
        %1029 = vst [vmem:[%s1018 + $0x50] sm:$0xff] %v985
        %1030 = vst [vmem:[%s1018 + $0x58] sm:$0xff] %v986
        %1031 = vst [vmem:[%s1018 + $0x60] sm:$0xff] %v987
        %1032 = vst [vmem:[%s1018 + $0x68] sm:$0xff] %v988
        %s1033 = sand.u32 %s97, 1
        %s1034 = scalar_lea.sflag [#allocation4], %s1033
        %s1035 = sand.u32 %s97, 1
        %s1036 = smul.addr %s1035, 336
        %s1037 = scalar_lea.vmem [#allocation7], %s1036
        // Predicated region
        $region41: #{tpu_custom_call.1} parent=31 // pred_check
          %p1038 = pneg %p107
        $region42: #{tpu_custom_call.1} parent=31 // pred_check_branch
          %1040 = sbr.rel (%p1038) target = $region44
        $region43: #{tpu_custom_call.1} parent=31 // pred_region
          %1042 = vsyncadd %s1034, 0
          %s1043 = smul.addr %s21, 42
          %s1044 = smul.addr %s1043, 8
          %s1045 = scalar_lea.hbm %s3, %s1044
          %s1046 = sshll.u32 %s1037, 4
          %s1047 = int_to_ptr.vmem [resolvable:$true] %s1046
          %s1048 = sshll.u32 %s1045, 4
          %s1049 = int_to_ptr.hbm [resolvable:$true] %s1048
          %1054 = dma.vmem_to_hbm [thread:$0]  %s1047, 5376, %s1049, %s1034, 128, 128, 8
        $region44: #{tpu_custom_call.1} parent=31 // pred_fallthru
          _
      $region32: #{tpu_custom_call.1} parent=5 // pred_fallthru
        _
      %p1055 = scmp.le.s32.totalorder 2, %s16
      // Predicated region
      $region45: #{tpu_custom_call.1} parent=5 // pred_check
        %p1056 = pneg %p1055
      $region46: #{tpu_custom_call.1} parent=5 // pred_check_branch
        %1058 = sbr.rel (%p1056) target = $region48
      $region47: #{tpu_custom_call.1} parent=5 // pred_region
        %s1059 = ssub.s32 %s16, 2
        // Predicated region
        $region49: #{tpu_custom_call.1} parent=47 // pred_check
          %p1060 = pneg %p113
        $region50: #{tpu_custom_call.1} parent=47 // pred_check_branch
          %1062 = sbr.rel (%p1060) target = $region52
        $region51: #{tpu_custom_call.1} parent=47 // pred_region
          %s1063 = sand.u32 %s98, 1
          %s1064 = scalar_lea.sflag [#allocation4], %s1063
          %s1065 = sand.u32 %s98, 1
          %s1066 = smul.addr %s1065, 336
          %s1067 = scalar_lea.vmem [#allocation7], %s1066
          %1069 = dma.done %s1064, 5376
        $region52: #{tpu_custom_call.1} parent=47 // pred_fallthru
          _
      $region48: #{tpu_custom_call.1} parent=5 // pred_fallthru
        _
    $region6: #{tpu_custom_call.1} parent=1 // loop_footer
      %s20 = sadd.s32 1, %s16
    $region7: #{tpu_custom_call.1} parent=1 // loop_footer_branch
      %15 = sbr.rel target = $region3
    $region8: #{tpu_custom_call.1} parent=1 // loop_exit
      _
    %1070 = vsyncpa [#allocation3], 1
    %s1071 = scalar_lea.sflag [#allocation3], 1
    %1072 = vsyncpa %s1071, 1
    %1073 = vsyncpa [#allocation6], 1
    %1074 = vsyncpa [#allocation4], 1
    %s1075 = scalar_lea.sflag [#allocation4], 1
    %1076 = vsyncpa %s1075, 1

</llo_original>
